<compile_context>
chip_gen: v7x
topology: tpu7x:2x2x1
jax: 0.10.0
libtpu: 0.0.40
codegen_flags: <defaults>
</compile_context>

<pallas_src>
import functools
import math

import jax
import jax.numpy as jnp
import numpy as np
from jax import lax
from jax.experimental import pallas as pl
from jax.experimental.pallas import tpu as pltpu

LN_EPS = 1e-5


def _layernorm(x, gamma, beta):
    # x: (N, C) f32, gamma/beta: (1, C) f32.  One-pass statistics.
    mean = jnp.mean(x, axis=-1, keepdims=True)
    mean_sq = jnp.mean(x * x, axis=-1, keepdims=True)
    var = mean_sq - mean * mean
    inv = lax.rsqrt(var + LN_EPS)
    return (x - mean) * inv * gamma + beta


def _gelu_exact(x):
    # exact (erf-based) GELU, matching torch.nn.GELU() default
    return 0.5 * x * (1.0 + lax.erf(x * (1.0 / math.sqrt(2.0))))


def self_attention_kernel(
    x_ref,       # (1, N, C)  f32   one batch element's tokens
    vecs_ref,    # (8, C)     f32   rows: ln1_g, ln1_b, ln2_g, ln2_b, bo, b1, b2, pad
    bqkv_ref,    # (1, 3C)    f32   fused qkv bias (Q part pre-scaled by 1/sqrt(Dh))
    wqkv_ref,    # (C, 3C)    bf16  fused qkv weight, contraction-major (Q cols pre-scaled)
    wo_ref,      # (C, C)     bf16  out-proj weight, contraction-major
    wff_ref,     # (2, C, C)  bf16  FF weights, pre-transposed (in, out)
    out_ref,     # (1, N, C)
    *, num_heads: int,
):
    x = x_ref[0].astype(jnp.float32)              # (N, C)
    N, C = x.shape
    H = num_heads
    Dh = C // H

    vecs = vecs_ref[...]                          # (8, C) f32, loaded once
    ln1_g, ln1_b = vecs[0:1], vecs[1:2]
    ln2_g, ln2_b = vecs[2:3], vecs[3:4]
    bo, b1, b2 = vecs[4:5], vecs[5:6], vecs[6:7]

    # --- LayerNorm 1 (f32) ---
    x_ln = _layernorm(x, ln1_g, ln1_b)
    x_bf = x_ln.astype(jnp.bfloat16)

    # --- fused QKV projection: one MXU issue, (N, 3C); Q already carries 1/sqrt(Dh) ---
    qkv = jnp.dot(x_bf, wqkv_ref[...],
                  preferred_element_type=jnp.float32) + bqkv_ref[...]        # (N, 3C) f32

    # --- split heads via static lane slices + leading-axis stack (no cross-lane reshape)
    def heads(base):
        return jnp.stack(
            [qkv[:, base + h * Dh: base + (h + 1) * Dh] for h in range(H)], axis=0)

    q = heads(0).astype(jnp.bfloat16)             # (H, N, Dh)
    k = heads(C).astype(jnp.bfloat16)             # (H, N, Dh)
    v = heads(2 * C).astype(jnp.bfloat16)         # (H, N, Dh)

    # --- batched attention core across heads: one score dot, one softmax, one P@V ---
    s = jnp.einsum('hqd,hkd->hqk', q, k,
                   preferred_element_type=jnp.float32)                       # (H, N, N)
    s = s - jnp.max(s, axis=-1, keepdims=True)
    p = jnp.exp(s)
    denom = jnp.sum(p, axis=-1, keepdims=True)
    r = pl.reciprocal(denom, approx=True)         # EUP slot (otherwise idle here)
    r = r * (2.0 - denom * r)                     # one Newton step -> ~f32 accuracy
    p = (p * r).astype(jnp.bfloat16)
    o = jnp.einsum('hqk,hkd->hqd', p, v,
                   preferred_element_type=jnp.float32)                       # (H, N, Dh)

    # --- merge heads on the lane axis; single out-projection (one K=C MXU dot) ---
    o2 = jnp.concatenate([o[h] for h in range(H)], axis=-1).astype(jnp.bfloat16)  # (N, C)
    attn = jnp.dot(o2, wo_ref[...], preferred_element_type=jnp.float32) + bo

    # --- residual 1 ---
    h1 = attn + x

    # --- feed-forward: LN -> Linear -> GELU -> Linear (pre-transposed weights) ---
    h_ln = _layernorm(h1, ln2_g, ln2_b)
    ff = jnp.dot(h_ln.astype(jnp.bfloat16), wff_ref[0],
                 preferred_element_type=jnp.float32) + b1
    ff = _gelu_exact(ff)
    ff = jnp.dot(ff.astype(jnp.bfloat16), wff_ref[1],
                 preferred_element_type=jnp.float32) + b2

    out_ref[0] = (ff + h1).astype(out_ref.dtype)


def _pack_params(params, num_heads):
    """Pre-transpose / pre-fuse all parameters outside the kernel."""
    (ln1_g, ln1_b, wqkv, bqkv, wo, bo, ln2_g, ln2_b, w1, b1, w2, b2) = params
    C = wo.shape[0]
    Dh = C // num_heads
    scale = 1.0 / math.sqrt(Dh)

    def row(vv):
        return jnp.asarray(vv, jnp.float32).reshape(1, C)

    vecs = jnp.concatenate(
        [row(ln1_g), row(ln1_b), row(ln2_g), row(ln2_b),
         row(bo), row(b1), row(b2), jnp.zeros((1, C), jnp.float32)], axis=0)       # (8, C)

    # Fused qkv weight (C, 3C), contraction-major; fold 1/sqrt(Dh) into Q columns/bias.
    col_scale = jnp.concatenate([jnp.full((C,), scale, jnp.float32),
                                 jnp.ones((2 * C,), jnp.float32)])
    wqkv2d = (jnp.asarray(wqkv, jnp.float32).T * col_scale[None, :]).astype(jnp.bfloat16)  # (C, 3C)
    bqkv_row = jnp.asarray(bqkv, jnp.float32).reshape(1, 3 * C) * col_scale[None, :]       # (1, 3C)

    wo2d = jnp.asarray(wo, jnp.float32).T.astype(jnp.bfloat16)                     # (C, C)
    wff = jnp.stack([jnp.asarray(w1, jnp.float32).T,
                     jnp.asarray(w2, jnp.float32).T], axis=0).astype(jnp.bfloat16)  # (2, C, C)
    return vecs, bqkv_row, wqkv2d, wo2d, wff


def self_attention_forward(x, params, *, num_heads=4):
    """x: (B, C, S, S, S) -> (B, C, S, S, S), matching the PyTorch module."""
    B, C, S = x.shape[0], x.shape[1], x.shape[-1]
    N = S * S * S

    x_tok = jnp.swapaxes(x.reshape(B, C, N), 1, 2)        # (B, N, C)
    vecs, bqkv_row, wqkv2d, wo2d, wff = _pack_params(params, num_heads)

    kernel = functools.partial(self_attention_kernel, num_heads=num_heads)

    out_tok = pl.pallas_call(
        kernel,
        out_shape=jax.ShapeDtypeStruct((B, N, C), x.dtype),
        grid_spec=pl.GridSpec(
            grid=(B,),
            in_specs=[
                pl.BlockSpec((1, N, C), lambda b: (b, 0, 0)),      # tokens
                pl.BlockSpec((8, C), lambda b: (0, 0)),            # packed ln/bias vectors
                pl.BlockSpec((1, 3 * C), lambda b: (0, 0)),        # fused qkv bias
                pl.BlockSpec((C, 3 * C), lambda b: (0, 0)),        # fused qkv weight
                pl.BlockSpec((C, C), lambda b: (0, 0)),            # out-proj weight
                pl.BlockSpec((2, C, C), lambda b: (0, 0, 0)),      # FF weights
            ],
            out_specs=pl.BlockSpec((1, N, C), lambda b: (b, 0, 0)),
        ),
        compiler_params=pltpu.CompilerParams(
            dimension_semantics=("parallel",)),   # shards B across v7x's two TensorCores
    )(x_tok, vecs, bqkv_row, wqkv2d, wo2d, wff)

    return jnp.swapaxes(out_tok, 1, 2).reshape(B, C, S, S, S)


def reference_forward(x, params, *, num_heads=4):
    """Pure-JAX reference of the PyTorch forward, emulating the kernel's mixed precision
    (bf16 matmul operands with the same scale folding, f32 accumulation)."""
    (ln1_g, ln1_b, wqkv, bqkv, wo, bo, ln2_g, ln2_b, w1, b1, w2, b2) = params
    B, C, S = x.shape[0], x.shape[1], x.shape[-1]
    N = S * S * S
    H = num_heads
    Dh = C // H
    xt = jnp.swapaxes(x.reshape(B, C, N), 1, 2).astype(jnp.float32)   # (B, N, C)

    def ln(t, g, b):
        m = jnp.mean(t, -1, keepdims=True)
        v = jnp.mean((t - m) ** 2, -1, keepdims=True)
        return (t - m) * lax.rsqrt(v + LN_EPS) * g.reshape(1, 1, C) + b.reshape(1, 1, C)

    def mm(a, w):  # bf16 operands, f32 accumulate (matches kernel)
        return jnp.einsum("...k,kj->...j", a.astype(jnp.bfloat16),
                          jnp.asarray(w, jnp.float32).astype(jnp.bfloat16),
                          preferred_element_type=jnp.float32)

    col_scale = jnp.concatenate([jnp.full((C,), 1.0 / math.sqrt(Dh), jnp.float32),
                                 jnp.ones((2 * C,), jnp.float32)])
    x_ln = ln(xt, ln1_g, ln1_b)
    qkv = mm(x_ln, jnp.asarray(wqkv, jnp.float32).T * col_scale[None, :]) \
        + jnp.asarray(bqkv, jnp.float32).reshape(1, 1, 3 * C) * col_scale[None, None, :]
    q, k, v = qkv[..., :C], qkv[..., C:2 * C], qkv[..., 2 * C:]

    def split(t):  # (B, N, C) -> (B, H, N, Dh)
        return jnp.swapaxes(t.reshape(B, N, H, Dh), 1, 2).astype(jnp.bfloat16)

    q, k, v = split(q), split(k), split(v)
    scores = jnp.einsum("bhqd,bhkd->bhqk", q, k, preferred_element_type=jnp.float32)
    p = jax.nn.softmax(scores, axis=-1).astype(jnp.bfloat16)
    o = jnp.einsum("bhqk,bhkd->bhqd", p, v, preferred_element_type=jnp.float32)
    o = jnp.swapaxes(o, 1, 2).reshape(B, N, C)
    o = mm(o, jnp.asarray(wo, jnp.float32).T) + jnp.asarray(bo, jnp.float32).reshape(1, 1, C)
    h1 = o + xt
    hf = ln(h1, ln2_g, ln2_b)
    hf = mm(hf, jnp.asarray(w1, jnp.float32).T) + jnp.asarray(b1, jnp.float32).reshape(1, 1, C)
    hf = 0.5 * hf * (1.0 + lax.erf(hf / math.sqrt(2.0)))
    hf = mm(hf, jnp.asarray(w2, jnp.float32).T) + jnp.asarray(b2, jnp.float32).reshape(1, 1, C)
    out = hf + h1
    return jnp.swapaxes(out, 1, 2).reshape(B, C, S, S, S)


def init_params(key, channels):
    C = channels
    ks = jax.random.split(key, 8)
    s_in = 1.0 / math.sqrt(C)
    ln1_g = jnp.ones((1, C), jnp.float32)
    ln1_b = jnp.zeros((1, C), jnp.float32)
    wqkv = jax.random.uniform(ks[0], (3 * C, C), jnp.float32, -s_in, s_in)
    bqkv = jax.random.uniform(ks[1], (1, 3 * C), jnp.float32, -s_in, s_in)
    wo = jax.random.uniform(ks[2], (C, C), jnp.float32, -s_in, s_in)
    bo = jax.random.uniform(ks[3], (1, C), jnp.float32, -s_in, s_in)
    ln2_g = jnp.ones((1, C), jnp.float32)
    ln2_b = jnp.zeros((1, C), jnp.float32)
    w1 = jax.random.uniform(ks[4], (C, C), jnp.float32, -s_in, s_in)
    b1 = jax.random.uniform(ks[5], (1, C), jnp.float32, -s_in, s_in)
    w2 = jax.random.uniform(ks[6], (C, C), jnp.float32, -s_in, s_in)
    b2 = jax.random.uniform(ks[7], (1, C), jnp.float32, -s_in, s_in)
    return (ln1_g, ln1_b, wqkv, bqkv, wo, bo, ln2_g, ln2_b, w1, b1, w2, b2)


if __name__ == "__main__":
    B, C, S = 2, 32, 4          # channels=32, num_heads=4, 3D volume 4x4x4 -> N=64 tokens
    num_heads = 4
    key = jax.random.PRNGKey(0)
    k_x, k_p = jax.random.split(key)
    x = jax.random.normal(k_x, (B, C, S, S, S), jnp.float32)
    params = init_params(k_p, C)

    out = self_attention_forward(x, params, num_heads=num_heads)
    out = jax.block_until_ready(out)

    ref = jax.block_until_ready(reference_forward(x, params, num_heads=num_heads))
    np.testing.assert_allclose(np.asarray(out), np.asarray(ref), rtol=2e-3, atol=2e-3)

    print("KERNEL_OK")
</pallas_src>

<mosaic_0001>
module attributes {stable_mosaic.version = 11 : i64} {
  func.func @self_attention_kernel(%arg0: i32, %arg1: memref<1x64x32xf32, #tpu.memory_space<vmem>>, %arg2: memref<8x32xf32, #tpu.memory_space<vmem>>, %arg3: memref<1x96xf32, #tpu.memory_space<vmem>>, %arg4: memref<32x96xbf16, #tpu.memory_space<vmem>>, %arg5: memref<32x32xbf16, #tpu.memory_space<vmem>>, %arg6: memref<2x32x32xbf16, #tpu.memory_space<vmem>>, %arg7: memref<1x64x32xf32, #tpu.memory_space<vmem>>) attributes {dimension_semantics = [#tpu.dimension_semantics<parallel>], iteration_bounds = array<i64: 2>, scalar_prefetch = 0 : i64, scratch_operands = 0 : i64, tpu.core_type = #tpu.core_type<tc>, window_params = [{transform_indices = @transform_0, window_bounds = array<i64: 1, 64, 32>}, {pipeline_mode = #tpu.pipeline_mode<synchronous>, transform_indices = @transform_1, window_bounds = array<i64: 8, 32>}, {pipeline_mode = #tpu.pipeline_mode<synchronous>, transform_indices = @transform_2, window_bounds = array<i64: 1, 96>}, {pipeline_mode = #tpu.pipeline_mode<synchronous>, transform_indices = @transform_3, window_bounds = array<i64: 32, 96>}, {pipeline_mode = #tpu.pipeline_mode<synchronous>, transform_indices = @transform_4, window_bounds = array<i64: 32, 32>}, {pipeline_mode = #tpu.pipeline_mode<synchronous>, transform_indices = @transform_5, window_bounds = array<i64: 2, 32, 32>}, {transform_indices = @transform_6, window_bounds = array<i64: 1, 64, 32>}]} {
    %c0 = arith.constant 0 : index
    %c0_0 = arith.constant 0 : index
    %c0_1 = arith.constant 0 : index
    %0 = vector.load %arg1[%c0, %c0_0, %c0_1] : memref<1x64x32xf32, #tpu.memory_space<vmem>>, vector<1x64x32xf32>
    %1 = vector.shape_cast %0 : vector<1x64x32xf32> to vector<64x32xf32>
    %c0_2 = arith.constant 0 : index
    %c0_3 = arith.constant 0 : index
    %2 = vector.load %arg2[%c0_2, %c0_3] : memref<8x32xf32, #tpu.memory_space<vmem>>, vector<8x32xf32>
    %3 = vector.extract_strided_slice %2 {offsets = [0, 0], sizes = [1, 32], strides = [1, 1]} : vector<8x32xf32> to vector<1x32xf32>
    %4 = vector.extract_strided_slice %2 {offsets = [1, 0], sizes = [1, 32], strides = [1, 1]} : vector<8x32xf32> to vector<1x32xf32>
    %5 = vector.extract_strided_slice %2 {offsets = [2, 0], sizes = [1, 32], strides = [1, 1]} : vector<8x32xf32> to vector<1x32xf32>
    %6 = vector.extract_strided_slice %2 {offsets = [3, 0], sizes = [1, 32], strides = [1, 1]} : vector<8x32xf32> to vector<1x32xf32>
    %7 = vector.extract_strided_slice %2 {offsets = [4, 0], sizes = [1, 32], strides = [1, 1]} : vector<8x32xf32> to vector<1x32xf32>
    %8 = vector.extract_strided_slice %2 {offsets = [5, 0], sizes = [1, 32], strides = [1, 1]} : vector<8x32xf32> to vector<1x32xf32>
    %9 = vector.extract_strided_slice %2 {offsets = [6, 0], sizes = [1, 32], strides = [1, 1]} : vector<8x32xf32> to vector<1x32xf32>
    %cst = arith.constant dense<0.000000e+00> : vector<64xf32>
    %10 = vector.multi_reduction <add>, %1, %cst [1] : vector<64x32xf32> to vector<64xf32>
    %11 = vector.shape_cast %10 : vector<64xf32> to vector<64x1xf32>
    %cst_4 = arith.constant 3.200000e+01 : f32
    %12 = vector.broadcast %cst_4 : f32 to vector<64x1xf32>
    %13 = arith.divf %11, %12 : vector<64x1xf32>
    %14 = arith.mulf %1, %1 : vector<64x32xf32>
    %cst_5 = arith.constant dense<0.000000e+00> : vector<64xf32>
    %15 = vector.multi_reduction <add>, %14, %cst_5 [1] : vector<64x32xf32> to vector<64xf32>
    %16 = vector.shape_cast %15 : vector<64xf32> to vector<64x1xf32>
    %cst_6 = arith.constant 3.200000e+01 : f32
    %17 = vector.broadcast %cst_6 : f32 to vector<64x1xf32>
    %18 = arith.divf %16, %17 : vector<64x1xf32>
    %19 = arith.mulf %13, %13 : vector<64x1xf32>
    %20 = arith.subf %18, %19 : vector<64x1xf32>
    %cst_7 = arith.constant 9.99999974E-6 : f32
    %21 = vector.broadcast %cst_7 : f32 to vector<64x1xf32>
    %22 = arith.addf %20, %21 : vector<64x1xf32>
    %23 = math.rsqrt %22 : vector<64x1xf32>
    %24 = vector.broadcast %13 : vector<64x1xf32> to vector<64x32xf32>
    %25 = arith.subf %1, %24 : vector<64x32xf32>
    %26 = vector.broadcast %23 : vector<64x1xf32> to vector<64x32xf32>
    %27 = arith.mulf %25, %26 : vector<64x32xf32>
    %28 = vector.broadcast %3 : vector<1x32xf32> to vector<64x32xf32>
    %29 = arith.mulf %27, %28 : vector<64x32xf32>
    %30 = vector.broadcast %4 : vector<1x32xf32> to vector<64x32xf32>
    %31 = arith.addf %29, %30 : vector<64x32xf32>
    %32 = arith.truncf %31 : vector<64x32xf32> to vector<64x32xbf16>
    %c0_8 = arith.constant 0 : index
    %c0_9 = arith.constant 0 : index
    %33 = vector.load %arg4[%c0_8, %c0_9] : memref<32x96xbf16, #tpu.memory_space<vmem>>, vector<32x96xbf16>
    %cst_10 = arith.constant dense<0.000000e+00> : vector<64x96xf32>
    %34 = tpu.matmul %32, %33, %cst_10 {dimension_numbers = #tpu.dot_dimension_numbers<[1], [0], [0], [1], [0, 0, 1, 1], [], []>} : vector<64x32xbf16>, vector<32x96xbf16>, vector<64x96xf32> -> vector<64x96xf32>
    %c0_11 = arith.constant 0 : index
    %c0_12 = arith.constant 0 : index
    %35 = vector.load %arg3[%c0_11, %c0_12] : memref<1x96xf32, #tpu.memory_space<vmem>>, vector<1x96xf32>
    %36 = vector.broadcast %35 : vector<1x96xf32> to vector<64x96xf32>
    %37 = arith.addf %34, %36 : vector<64x96xf32>
    %38 = vector.extract_strided_slice %37 {offsets = [0, 0], sizes = [64, 8], strides = [1, 1]} : vector<64x96xf32> to vector<64x8xf32>
    %39 = vector.extract_strided_slice %37 {offsets = [0, 8], sizes = [64, 8], strides = [1, 1]} : vector<64x96xf32> to vector<64x8xf32>
    %40 = vector.extract_strided_slice %37 {offsets = [0, 16], sizes = [64, 8], strides = [1, 1]} : vector<64x96xf32> to vector<64x8xf32>
    %41 = vector.extract_strided_slice %37 {offsets = [0, 24], sizes = [64, 8], strides = [1, 1]} : vector<64x96xf32> to vector<64x8xf32>
    %42 = vector.shape_cast %38 : vector<64x8xf32> to vector<1x64x8xf32>
    %43 = vector.shape_cast %39 : vector<64x8xf32> to vector<1x64x8xf32>
    %44 = vector.shape_cast %40 : vector<64x8xf32> to vector<1x64x8xf32>
    %45 = vector.shape_cast %41 : vector<64x8xf32> to vector<1x64x8xf32>
    %46 = tpu.concatenate %42, %43, %44, %45 in 0 : vector<1x64x8xf32>, vector<1x64x8xf32>, vector<1x64x8xf32>, vector<1x64x8xf32> -> vector<4x64x8xf32>
    %47 = arith.truncf %46 : vector<4x64x8xf32> to vector<4x64x8xbf16>
    %48 = vector.extract_strided_slice %37 {offsets = [0, 32], sizes = [64, 8], strides = [1, 1]} : vector<64x96xf32> to vector<64x8xf32>
    %49 = vector.extract_strided_slice %37 {offsets = [0, 40], sizes = [64, 8], strides = [1, 1]} : vector<64x96xf32> to vector<64x8xf32>
    %50 = vector.extract_strided_slice %37 {offsets = [0, 48], sizes = [64, 8], strides = [1, 1]} : vector<64x96xf32> to vector<64x8xf32>
    %51 = vector.extract_strided_slice %37 {offsets = [0, 56], sizes = [64, 8], strides = [1, 1]} : vector<64x96xf32> to vector<64x8xf32>
    %52 = vector.shape_cast %48 : vector<64x8xf32> to vector<1x64x8xf32>
    %53 = vector.shape_cast %49 : vector<64x8xf32> to vector<1x64x8xf32>
    %54 = vector.shape_cast %50 : vector<64x8xf32> to vector<1x64x8xf32>
    %55 = vector.shape_cast %51 : vector<64x8xf32> to vector<1x64x8xf32>
    %56 = tpu.concatenate %52, %53, %54, %55 in 0 : vector<1x64x8xf32>, vector<1x64x8xf32>, vector<1x64x8xf32>, vector<1x64x8xf32> -> vector<4x64x8xf32>
    %57 = arith.truncf %56 : vector<4x64x8xf32> to vector<4x64x8xbf16>
    %58 = vector.extract_strided_slice %37 {offsets = [0, 64], sizes = [64, 8], strides = [1, 1]} : vector<64x96xf32> to vector<64x8xf32>
    %59 = vector.extract_strided_slice %37 {offsets = [0, 72], sizes = [64, 8], strides = [1, 1]} : vector<64x96xf32> to vector<64x8xf32>
    %60 = vector.extract_strided_slice %37 {offsets = [0, 80], sizes = [64, 8], strides = [1, 1]} : vector<64x96xf32> to vector<64x8xf32>
    %61 = vector.extract_strided_slice %37 {offsets = [0, 88], sizes = [64, 8], strides = [1, 1]} : vector<64x96xf32> to vector<64x8xf32>
    %62 = vector.shape_cast %58 : vector<64x8xf32> to vector<1x64x8xf32>
    %63 = vector.shape_cast %59 : vector<64x8xf32> to vector<1x64x8xf32>
    %64 = vector.shape_cast %60 : vector<64x8xf32> to vector<1x64x8xf32>
    %65 = vector.shape_cast %61 : vector<64x8xf32> to vector<1x64x8xf32>
    %66 = tpu.concatenate %62, %63, %64, %65 in 0 : vector<1x64x8xf32>, vector<1x64x8xf32>, vector<1x64x8xf32>, vector<1x64x8xf32> -> vector<4x64x8xf32>
    %67 = arith.truncf %66 : vector<4x64x8xf32> to vector<4x64x8xbf16>
    "tpu.trace_start"() <{level = 10 : i32, message = "hqd,hkd->hqk"}> : () -> ()
    %cst_13 = arith.constant dense<0.000000e+00> : vector<4x64x64xf32>
    %68 = tpu.matmul %47, %57, %cst_13 {dimension_numbers = #tpu.dot_dimension_numbers<[2], [2], [1], [1], [0, 0, 0, 1, 1, 1], [0], [0]>} : vector<4x64x8xbf16>, vector<4x64x8xbf16>, vector<4x64x64xf32> -> vector<4x64x64xf32>
    "tpu.trace_stop"() : () -> ()
    %cst_14 = arith.constant dense<0xFF800000> : vector<4x64xf32>
    %69 = vector.multi_reduction <maximumf>, %68, %cst_14 [2] : vector<4x64x64xf32> to vector<4x64xf32>
    %70 = vector.shape_cast %69 : vector<4x64xf32> to vector<4x64x1xf32>
    %71 = vector.broadcast %70 : vector<4x64x1xf32> to vector<4x64x64xf32>
    %72 = arith.subf %68, %71 : vector<4x64x64xf32>
    %73 = math.exp %72 : vector<4x64x64xf32>
    %cst_15 = arith.constant dense<0.000000e+00> : vector<4x64xf32>
    %74 = vector.multi_reduction <add>, %73, %cst_15 [2] : vector<4x64x64xf32> to vector<4x64xf32>
    %75 = vector.shape_cast %74 : vector<4x64xf32> to vector<4x64x1xf32>
    %76 = tpu.reciprocal %75 {approx = true} : vector<4x64x1xf32> -> vector<4x64x1xf32>
    %77 = arith.mulf %75, %76 : vector<4x64x1xf32>
    %cst_16 = arith.constant 2.000000e+00 : f32
    %78 = vector.broadcast %cst_16 : f32 to vector<4x64x1xf32>
    %79 = arith.subf %78, %77 : vector<4x64x1xf32>
    %80 = arith.mulf %76, %79 : vector<4x64x1xf32>
    %81 = vector.broadcast %80 : vector<4x64x1xf32> to vector<4x64x64xf32>
    %82 = arith.mulf %73, %81 : vector<4x64x64xf32>
    %83 = arith.truncf %82 : vector<4x64x64xf32> to vector<4x64x64xbf16>
    "tpu.trace_start"() <{level = 10 : i32, message = "hqk,hkd->hqd"}> : () -> ()
    %cst_17 = arith.constant dense<0.000000e+00> : vector<4x64x8xf32>
    %84 = tpu.matmul %83, %67, %cst_17 {dimension_numbers = #tpu.dot_dimension_numbers<[2], [1], [1], [2], [0, 0, 0, 1, 1, 2], [0], [0]>} : vector<4x64x64xbf16>, vector<4x64x8xbf16>, vector<4x64x8xf32> -> vector<4x64x8xf32>
    "tpu.trace_stop"() : () -> ()
    %85 = vector.extract_strided_slice %84 {offsets = [0, 0, 0], sizes = [1, 64, 8], strides = [1, 1, 1]} : vector<4x64x8xf32> to vector<1x64x8xf32>
    %86 = vector.shape_cast %85 : vector<1x64x8xf32> to vector<64x8xf32>
    %87 = vector.extract_strided_slice %84 {offsets = [1, 0, 0], sizes = [1, 64, 8], strides = [1, 1, 1]} : vector<4x64x8xf32> to vector<1x64x8xf32>
    %88 = vector.shape_cast %87 : vector<1x64x8xf32> to vector<64x8xf32>
    %89 = vector.extract_strided_slice %84 {offsets = [2, 0, 0], sizes = [1, 64, 8], strides = [1, 1, 1]} : vector<4x64x8xf32> to vector<1x64x8xf32>
    %90 = vector.shape_cast %89 : vector<1x64x8xf32> to vector<64x8xf32>
    %91 = vector.extract_strided_slice %84 {offsets = [3, 0, 0], sizes = [1, 64, 8], strides = [1, 1, 1]} : vector<4x64x8xf32> to vector<1x64x8xf32>
    %92 = vector.shape_cast %91 : vector<1x64x8xf32> to vector<64x8xf32>
    %93 = tpu.concatenate %86, %88, %90, %92 in 1 : vector<64x8xf32>, vector<64x8xf32>, vector<64x8xf32>, vector<64x8xf32> -> vector<64x32xf32>
    %94 = arith.truncf %93 : vector<64x32xf32> to vector<64x32xbf16>
    %c0_18 = arith.constant 0 : index
    %c0_19 = arith.constant 0 : index
    %95 = vector.load %arg5[%c0_18, %c0_19] : memref<32x32xbf16, #tpu.memory_space<vmem>>, vector<32x32xbf16>
    %cst_20 = arith.constant dense<0.000000e+00> : vector<64x32xf32>
    %96 = tpu.matmul %94, %95, %cst_20 {dimension_numbers = #tpu.dot_dimension_numbers<[1], [0], [0], [1], [0, 0, 1, 1], [], []>} : vector<64x32xbf16>, vector<32x32xbf16>, vector<64x32xf32> -> vector<64x32xf32>
    %97 = vector.broadcast %7 : vector<1x32xf32> to vector<64x32xf32>
    %98 = arith.addf %96, %97 : vector<64x32xf32>
    %99 = arith.addf %98, %1 : vector<64x32xf32>
    %cst_21 = arith.constant dense<0.000000e+00> : vector<64xf32>
    %100 = vector.multi_reduction <add>, %99, %cst_21 [1] : vector<64x32xf32> to vector<64xf32>
    %101 = vector.shape_cast %100 : vector<64xf32> to vector<64x1xf32>
    %cst_22 = arith.constant 3.200000e+01 : f32
    %102 = vector.broadcast %cst_22 : f32 to vector<64x1xf32>
    %103 = arith.divf %101, %102 : vector<64x1xf32>
    %104 = arith.mulf %99, %99 : vector<64x32xf32>
    %cst_23 = arith.constant dense<0.000000e+00> : vector<64xf32>
    %105 = vector.multi_reduction <add>, %104, %cst_23 [1] : vector<64x32xf32> to vector<64xf32>
    %106 = vector.shape_cast %105 : vector<64xf32> to vector<64x1xf32>
    %cst_24 = arith.constant 3.200000e+01 : f32
    %107 = vector.broadcast %cst_24 : f32 to vector<64x1xf32>
    %108 = arith.divf %106, %107 : vector<64x1xf32>
    %109 = arith.mulf %103, %103 : vector<64x1xf32>
    %110 = arith.subf %108, %109 : vector<64x1xf32>
    %cst_25 = arith.constant 9.99999974E-6 : f32
    %111 = vector.broadcast %cst_25 : f32 to vector<64x1xf32>
    %112 = arith.addf %110, %111 : vector<64x1xf32>
    %113 = math.rsqrt %112 : vector<64x1xf32>
    %114 = vector.broadcast %103 : vector<64x1xf32> to vector<64x32xf32>
    %115 = arith.subf %99, %114 : vector<64x32xf32>
    %116 = vector.broadcast %113 : vector<64x1xf32> to vector<64x32xf32>
    %117 = arith.mulf %115, %116 : vector<64x32xf32>
    %118 = vector.broadcast %5 : vector<1x32xf32> to vector<64x32xf32>
    %119 = arith.mulf %117, %118 : vector<64x32xf32>
    %120 = vector.broadcast %6 : vector<1x32xf32> to vector<64x32xf32>
    %121 = arith.addf %119, %120 : vector<64x32xf32>
    %122 = arith.truncf %121 : vector<64x32xf32> to vector<64x32xbf16>
    %c0_26 = arith.constant 0 : index
    %c0_27 = arith.constant 0 : index
    %c0_28 = arith.constant 0 : index
    %123 = vector.load %arg6[%c0_26, %c0_27, %c0_28] : memref<2x32x32xbf16, #tpu.memory_space<vmem>>, vector<1x32x32xbf16>
    %124 = vector.shape_cast %123 : vector<1x32x32xbf16> to vector<32x32xbf16>
    %cst_29 = arith.constant dense<0.000000e+00> : vector<64x32xf32>
    %125 = tpu.matmul %122, %124, %cst_29 {dimension_numbers = #tpu.dot_dimension_numbers<[1], [0], [0], [1], [0, 0, 1, 1], [], []>} : vector<64x32xbf16>, vector<32x32xbf16>, vector<64x32xf32> -> vector<64x32xf32>
    %126 = vector.broadcast %8 : vector<1x32xf32> to vector<64x32xf32>
    %127 = arith.addf %125, %126 : vector<64x32xf32>
    %cst_30 = arith.constant 5.000000e-01 : f32
    %128 = vector.broadcast %cst_30 : f32 to vector<64x32xf32>
    %129 = arith.mulf %128, %127 : vector<64x32xf32>
    %cst_31 = arith.constant 0.707106769 : f32
    %130 = vector.broadcast %cst_31 : f32 to vector<64x32xf32>
    %131 = arith.mulf %127, %130 : vector<64x32xf32>
    %132 = math.erf %131 : vector<64x32xf32>
    %cst_32 = arith.constant 1.000000e+00 : f32
    %133 = vector.broadcast %cst_32 : f32 to vector<64x32xf32>
    %134 = arith.addf %133, %132 : vector<64x32xf32>
    %135 = arith.mulf %129, %134 : vector<64x32xf32>
    %136 = arith.truncf %135 : vector<64x32xf32> to vector<64x32xbf16>
    %c1 = arith.constant 1 : index
    %c0_33 = arith.constant 0 : index
    %c0_34 = arith.constant 0 : index
    %137 = vector.load %arg6[%c1, %c0_33, %c0_34] : memref<2x32x32xbf16, #tpu.memory_space<vmem>>, vector<1x32x32xbf16>
    %138 = vector.shape_cast %137 : vector<1x32x32xbf16> to vector<32x32xbf16>
    %cst_35 = arith.constant dense<0.000000e+00> : vector<64x32xf32>
    %139 = tpu.matmul %136, %138, %cst_35 {dimension_numbers = #tpu.dot_dimension_numbers<[1], [0], [0], [1], [0, 0, 1, 1], [], []>} : vector<64x32xbf16>, vector<32x32xbf16>, vector<64x32xf32> -> vector<64x32xf32>
    %140 = vector.broadcast %9 : vector<1x32xf32> to vector<64x32xf32>
    %141 = arith.addf %139, %140 : vector<64x32xf32>
    %142 = arith.addf %141, %99 : vector<64x32xf32>
    %c0_36 = arith.constant 0 : index
    %c0_37 = arith.constant 0 : index
    %c0_38 = arith.constant 0 : index
    %143 = vector.load %arg7[%c0_36, %c0_37, %c0_38] : memref<1x64x32xf32, #tpu.memory_space<vmem>>, vector<1x64x32xf32>
    %144 = vector.shape_cast %143 : vector<1x64x32xf32> to vector<64x32xf32>
    %145 = vector.shape_cast %142 : vector<64x32xf32> to vector<1x64x32xf32>
    tpu.vector_store %arg7[%c0_36, %c0_37, %c0_38], %145 {strides = array<i32>} : memref<1x64x32xf32, #tpu.memory_space<vmem>>, vector<1x64x32xf32>,
    return
  }
  func.func @transform_0(%arg0: i32) -> (i32, i32, i32) {
    %c0_i32 = arith.constant 0 : i32
    %c0_i32_0 = arith.constant 0 : i32
    %c0_i32_1 = arith.constant 0 : i32
    return %arg0, %c0_i32, %c0_i32_0 : i32, i32, i32
  }
  func.func @transform_1(%arg0: i32) -> (i32, i32) {
    %c0_i32 = arith.constant 0 : i32
    %c0_i32_0 = arith.constant 0 : i32
    %c0_i32_1 = arith.constant 0 : i32
    return %c0_i32, %c0_i32_0 : i32, i32
  }
  func.func @transform_2(%arg0: i32) -> (i32, i32) {
    %c0_i32 = arith.constant 0 : i32
    %c0_i32_0 = arith.constant 0 : i32
    %c0_i32_1 = arith.constant 0 : i32
    return %c0_i32, %c0_i32_0 : i32, i32
  }
  func.func @transform_3(%arg0: i32) -> (i32, i32) {
    %c0_i32 = arith.constant 0 : i32
    %c0_i32_0 = arith.constant 0 : i32
    %c0_i32_1 = arith.constant 0 : i32
    return %c0_i32, %c0_i32_0 : i32, i32
  }
  func.func @transform_4(%arg0: i32) -> (i32, i32) {
    %c0_i32 = arith.constant 0 : i32
    %c0_i32_0 = arith.constant 0 : i32
    %c0_i32_1 = arith.constant 0 : i32
    return %c0_i32, %c0_i32_0 : i32, i32
  }
  func.func @transform_5(%arg0: i32) -> (i32, i32, i32) {
    %c0_i32 = arith.constant 0 : i32
    %c0_i32_0 = arith.constant 0 : i32
    %c0_i32_1 = arith.constant 0 : i32
    %c0_i32_2 = arith.constant 0 : i32
    return %c0_i32, %c0_i32_0, %c0_i32_1 : i32, i32, i32
  }
  func.func @transform_6(%arg0: i32) -> (i32, i32, i32) {
    %c0_i32 = arith.constant 0 : i32
    %c0_i32_0 = arith.constant 0 : i32
    %c0_i32_1 = arith.constant 0 : i32
    return %arg0, %c0_i32, %c0_i32_0 : i32, i32, i32
  }
}

</mosaic_0001>

<llo_original>
// kernel: tpu_custom_call.1
$region0: #{tpu_custom_call.1}
  #allocation0 [shape = 'u32[]', space=smem, size = 0x4, offset = 0x4, fixed_abs, tag = 'smem constant byte address 0x4 - core index']
  #allocation1 [shape = 'u32[144,128]{1,0:T(1,128)}', space=vmem, size = 0x12000, scoped, tag = 'internal scratch']
  %s0 = inlined_call_operand.vmem [shape: f32[2,64,32], index: 0, kind: input, shape index: {}]
  %s1 = inlined_call_operand.vmem [shape: f32[8,32], index: 1, kind: input, shape index: {}]
  %s2 = inlined_call_operand.vmem [shape: f32[1,96], index: 2, kind: input, shape index: {}]
  %s3 = inlined_call_operand.vmem [shape: bf16[32,96], index: 3, kind: input, shape index: {}]
  %s4 = inlined_call_operand.vmem [shape: bf16[32,32], index: 4, kind: input, shape index: {}]
  %s5 = inlined_call_operand.vmem [shape: bf16[2,32,32], index: 5, kind: input, shape index: {}]
  %s6 = inlined_call_operand.vmem [shape: f32[2,64,32], index: 6, kind: output, shape index: {}]
  %s7 = sld [smem:[#allocation0]]
  $region57: #{tpu_custom_call.1} parent=0
    _
  %s9 = ssub.s32 1, %s7
  %s10 = scalar_select 0, %s9, %s7
  loop: start=0, step=1, limit=4
  $region2: #{tpu_custom_call.1} parent=0 // loop_pre_header
    _
  $region3: #{tpu_custom_call.1} parent=0 // loop_header
    %s12 = sphi 0, %s16
    %p13 = scmp.ge.s32.totalorder %s12, 4
    %s22 = sphi 0, %s24
    %s25 = sphi 0, %s22
    %s26 = sphi 0, %s25
    %s42 = sphi 0, %s26
    %s46 = sphi 0, %s46
    %s48 = sphi 0, %s46
    %s49 = sphi 0, %s48
    %s63 = sphi 0, %s49
    %s67 = sphi 0, %s67
    %s69 = sphi 0, %s67
    %s70 = sphi 0, %s69
    %s84 = sphi 0, %s70
    %s88 = sphi 0, %s88
    %s90 = sphi 0, %s88
    %s91 = sphi 0, %s90
    %s105 = sphi 0, %s91
    %s109 = sphi 0, %s109
    %s111 = sphi 0, %s109
    %s112 = sphi 0, %s111
    %s126 = sphi 0, %s112
    %s130 = sphi 0, %s130
    %s132 = sphi 0, %s130
    %s133 = sphi 0, %s132
    %s147 = sphi 0, %s133
    %s153 = sphi 0, %s155
    %s156 = sphi 0, %s153
    %s157 = sphi 0, %s156
    %s173 = sphi 0, %s157
  $region4: #{tpu_custom_call.1} parent=0 // loop_header_branch
    %15 = sbr.rel (%p13) target = $region8
  $region5: #{tpu_custom_call.1} parent=0 // loop_body
    %s17 = ssub.s32 %s12, 1
    %s18 = ssub.s32 %s12, 2
    %s19 = sadd.s32 %s12, 1
    %s20 = ssub.s32 %s12, %s19
    %p21 = scmp.eq.s32.totalorder %s20, 0
    %s23 = sadd.s32 %s22, 1
    %s24 = scalar_select %p21, %s22, %s23
    %p27 = pneg %p21
    %p28 = scmp.eq.s32.totalorder %s12, 1
    %p29 = por %p27, %p28
    %p30 = scmp.ne.s32.totalorder %s22, %s25
    %p31 = scmp.eq.s32.totalorder %s12, 0
    %p32 = por %p30, %p31
    %p33 = scmp.ne.s32.totalorder %s22, %s25
    %p34 = scmp.eq.s32.totalorder %s17, 1
    %p35 = por %p33, %p34
    %p36 = scmp.ne.s32.totalorder %s25, %s26
    %p37 = scmp.eq.s32.totalorder %s17, 0
    %p38 = por %p36, %p37
    %p39 = scmp.ne.s32.totalorder %s25, %s26
    %p40 = scmp.eq.s32.totalorder %s18, 1
    %p41 = por %p39, %p40
    %p43 = scmp.ne.s32.totalorder %s26, %s42
    %p44 = scmp.eq.s32.totalorder %s18, 0
    %p45 = por %p43, %p44
    %s47 = sadd.s32 %s46, 1
    %p50 = scmp.eq.s32.totalorder %s12, 1
    %p51 = scmp.ne.s32.totalorder %s46, %s48
    %p52 = scmp.eq.s32.totalorder %s12, 0
    %p53 = por %p51, %p52
    %p54 = scmp.ne.s32.totalorder %s46, %s48
    %p55 = scmp.eq.s32.totalorder %s17, 1
    %p56 = por %p54, %p55
    %p57 = scmp.ne.s32.totalorder %s48, %s49
    %p58 = scmp.eq.s32.totalorder %s17, 0
    %p59 = por %p57, %p58
    %p60 = scmp.ne.s32.totalorder %s48, %s49
    %p61 = scmp.eq.s32.totalorder %s18, 1
    %p62 = por %p60, %p61
    %p64 = scmp.ne.s32.totalorder %s49, %s63
    %p65 = scmp.eq.s32.totalorder %s18, 0
    %p66 = por %p64, %p65
    %s68 = sadd.s32 %s67, 1
    %p71 = scmp.eq.s32.totalorder %s12, 1
    %p72 = scmp.ne.s32.totalorder %s67, %s69
    %p73 = scmp.eq.s32.totalorder %s12, 0
    %p74 = por %p72, %p73
    %p75 = scmp.ne.s32.totalorder %s67, %s69
    %p76 = scmp.eq.s32.totalorder %s17, 1
    %p77 = por %p75, %p76
    %p78 = scmp.ne.s32.totalorder %s69, %s70
    %p79 = scmp.eq.s32.totalorder %s17, 0
    %p80 = por %p78, %p79
    %p81 = scmp.ne.s32.totalorder %s69, %s70
    %p82 = scmp.eq.s32.totalorder %s18, 1
    %p83 = por %p81, %p82
    %p85 = scmp.ne.s32.totalorder %s70, %s84
    %p86 = scmp.eq.s32.totalorder %s18, 0
    %p87 = por %p85, %p86
    %s89 = sadd.s32 %s88, 1
    %p92 = scmp.eq.s32.totalorder %s12, 1
    %p93 = scmp.ne.s32.totalorder %s88, %s90
    %p94 = scmp.eq.s32.totalorder %s12, 0
    %p95 = por %p93, %p94
    %p96 = scmp.ne.s32.totalorder %s88, %s90
    %p97 = scmp.eq.s32.totalorder %s17, 1
    %p98 = por %p96, %p97
    %p99 = scmp.ne.s32.totalorder %s90, %s91
    %p100 = scmp.eq.s32.totalorder %s17, 0
    %p101 = por %p99, %p100
    %p102 = scmp.ne.s32.totalorder %s90, %s91
    %p103 = scmp.eq.s32.totalorder %s18, 1
    %p104 = por %p102, %p103
    %p106 = scmp.ne.s32.totalorder %s91, %s105
    %p107 = scmp.eq.s32.totalorder %s18, 0
    %p108 = por %p106, %p107
    %s110 = sadd.s32 %s109, 1
    %p113 = scmp.eq.s32.totalorder %s12, 1
    %p114 = scmp.ne.s32.totalorder %s109, %s111
    %p115 = scmp.eq.s32.totalorder %s12, 0
    %p116 = por %p114, %p115
    %p117 = scmp.ne.s32.totalorder %s109, %s111
    %p118 = scmp.eq.s32.totalorder %s17, 1
    %p119 = por %p117, %p118
    %p120 = scmp.ne.s32.totalorder %s111, %s112
    %p121 = scmp.eq.s32.totalorder %s17, 0
    %p122 = por %p120, %p121
    %p123 = scmp.ne.s32.totalorder %s111, %s112
    %p124 = scmp.eq.s32.totalorder %s18, 1
    %p125 = por %p123, %p124
    %p127 = scmp.ne.s32.totalorder %s112, %s126
    %p128 = scmp.eq.s32.totalorder %s18, 0
    %p129 = por %p127, %p128
    %s131 = sadd.s32 %s130, 1
    %p134 = scmp.eq.s32.totalorder %s12, 1
    %p135 = scmp.ne.s32.totalorder %s130, %s132
    %p136 = scmp.eq.s32.totalorder %s12, 0
    %p137 = por %p135, %p136
    %p138 = scmp.ne.s32.totalorder %s130, %s132
    %p139 = scmp.eq.s32.totalorder %s17, 1
    %p140 = por %p138, %p139
    %p141 = scmp.ne.s32.totalorder %s132, %s133
    %p142 = scmp.eq.s32.totalorder %s17, 0
    %p143 = por %p141, %p142
    %p144 = scmp.ne.s32.totalorder %s132, %s133
    %p145 = scmp.eq.s32.totalorder %s18, 1
    %p146 = por %p144, %p145
    %p148 = scmp.ne.s32.totalorder %s133, %s147
    %p149 = scmp.eq.s32.totalorder %s18, 0
    %p150 = por %p148, %p149
    %s151 = ssub.s32 %s12, %s19
    %p152 = scmp.eq.s32.totalorder %s151, 0
    %s154 = sadd.s32 %s153, 1
    %s155 = scalar_select %p152, %s153, %s154
    %p158 = pneg %p152
    %p159 = scmp.eq.s32.totalorder %s12, 1
    %p160 = por %p158, %p159
    %p161 = scmp.ne.s32.totalorder %s153, %s156
    %p162 = scmp.eq.s32.totalorder %s12, 0
    %p163 = por %p161, %p162
    %p164 = scmp.ne.s32.totalorder %s153, %s156
    %p165 = scmp.eq.s32.totalorder %s17, 1
    %p166 = por %p164, %p165
    %p167 = scmp.ne.s32.totalorder %s156, %s157
    %p168 = scmp.eq.s32.totalorder %s17, 0
    %p169 = por %p167, %p168
    %p170 = scmp.ne.s32.totalorder %s156, %s157
    %p171 = scmp.eq.s32.totalorder %s18, 1
    %p172 = por %p170, %p171
    %p174 = scmp.ne.s32.totalorder %s157, %s173
    %p175 = scmp.eq.s32.totalorder %s18, 0
    %p176 = por %p174, %p175
    %p177 = scmp.le.s32.totalorder 1, %s12
    %p178 = scmp.lt.s32.totalorder %s12, 3
    %p179 = pnand %p177, %p178
    %p180 = pneg %p179
    // Predicated region
    $region9: #{tpu_custom_call.1} parent=5 // pred_check
      _
    $region10: #{tpu_custom_call.1} parent=5 // pred_check_branch
      %182 = sbr.rel (%p179) target = $region12
    $region11: #{tpu_custom_call.1} parent=5 // pred_region
      %s183 = ssub.s32 %s12, 1
      // Predicated region
      $region13: #{tpu_custom_call.1} parent=11 // pred_check
        %p184 = pneg %p59
      $region14: #{tpu_custom_call.1} parent=11 // pred_check_branch
        %186 = sbr.rel (%p184) target = $region16
      $region15: #{tpu_custom_call.1} parent=11 // pred_region
        _
      $region16: #{tpu_custom_call.1} parent=11 // pred_fallthru
        _
      // Predicated region
      $region17: #{tpu_custom_call.1} parent=11 // pred_check
        %p187 = pneg %p80
      $region18: #{tpu_custom_call.1} parent=11 // pred_check_branch
        %189 = sbr.rel (%p187) target = $region20
      $region19: #{tpu_custom_call.1} parent=11 // pred_region
        _
      $region20: #{tpu_custom_call.1} parent=11 // pred_fallthru
        _
      // Predicated region
      $region21: #{tpu_custom_call.1} parent=11 // pred_check
        %p190 = pneg %p101
      $region22: #{tpu_custom_call.1} parent=11 // pred_check_branch
        %192 = sbr.rel (%p190) target = $region24
      $region23: #{tpu_custom_call.1} parent=11 // pred_region
        _
      $region24: #{tpu_custom_call.1} parent=11 // pred_fallthru
        _
      // Predicated region
      $region25: #{tpu_custom_call.1} parent=11 // pred_check
        %p193 = pneg %p122
      $region26: #{tpu_custom_call.1} parent=11 // pred_check_branch
        %195 = sbr.rel (%p193) target = $region28
      $region27: #{tpu_custom_call.1} parent=11 // pred_region
        _
      $region28: #{tpu_custom_call.1} parent=11 // pred_fallthru
        _
      // Predicated region
      $region29: #{tpu_custom_call.1} parent=11 // pred_check
        %p196 = pneg %p143
      $region30: #{tpu_custom_call.1} parent=11 // pred_check_branch
        %198 = sbr.rel (%p196) target = $region32
      $region31: #{tpu_custom_call.1} parent=11 // pred_region
        _
      $region32: #{tpu_custom_call.1} parent=11 // pred_fallthru
        _
    $region12: #{tpu_custom_call.1} parent=5 // pred_fallthru
      _
    %p199 = scmp.lt.s32.totalorder %s12, 2
    // Predicated region
    $region33: #{tpu_custom_call.1} parent=5 // pred_check
      %p200 = pneg %p199
    $region34: #{tpu_custom_call.1} parent=5 // pred_check_branch
      %202 = sbr.rel (%p200) target = $region36
    $region35: #{tpu_custom_call.1} parent=5 // pred_region
      // Predicated region
      $region37: #{tpu_custom_call.1} parent=35 // pred_check
        %p203 = pneg %p32
      $region38: #{tpu_custom_call.1} parent=35 // pred_check_branch
        %205 = sbr.rel (%p203) target = $region40
      $region39: #{tpu_custom_call.1} parent=35 // pred_region
        %p206 = scmp.lt.s32.totalorder %s12, 1
        %s207 = scalar_select %p206, %s12, 1
        %s208 = smul.addr %s207, 8
        %s209 = smul.addr %s208, 8
        %s210 = scalar_lea.vmem %s0, %s209
      $region40: #{tpu_custom_call.1} parent=35 // pred_fallthru
        _
    $region36: #{tpu_custom_call.1} parent=5 // pred_fallthru
      _
    %p211 = scmp.le.s32.totalorder 1, %s12
    %p212 = scmp.lt.s32.totalorder %s12, 3
    %p213 = pnand %p211, %p212
    %p214 = pneg %p213
    // Predicated region
    $region41: #{tpu_custom_call.1} parent=5 // pred_check
      _
    $region42: #{tpu_custom_call.1} parent=5 // pred_check_branch
      %216 = sbr.rel (%p213) target = $region44
    $region43: #{tpu_custom_call.1} parent=5 // pred_region
      %s217 = ssub.s32 %s12, 1
      %p218 = scmp.lt.s32.totalorder %s17, 1
      %s219 = scalar_select %p218, %s17, 1
      %s220 = smul.addr %s219, 8
      %s221 = smul.addr %s220, 8
      %s222 = scalar_lea.vmem %s0, %s221
      %p223 = pneg %p38
      %p224 = pneg %p35
      %p225 = pneg %p59
      %p226 = pneg %p56
      %p227 = pneg %p80
      %p228 = pneg %p77
      %p229 = pneg %p101
      %p230 = pneg %p98
      %p231 = pneg %p122
      %p232 = pneg %p119
      %p233 = pneg %p143
      %p234 = pneg %p140
      %p235 = pneg %p169
      %p236 = pneg %p166
      %p237 = scmp.lt.s32.totalorder %s17, 1
      %s238 = scalar_select %p237, %s17, 1
      %s239 = smul.addr %s238, 8
      %s240 = smul.addr %s239, 8
      %s241 = scalar_lea.vmem %s6, %s240
      %p242 = scmp.lt.s32.totalorder %s17, 1
      %s243 = scalar_select %p242, %s17, 1
      %s244 = smul.addr %s243, 8
      %s245 = smul.addr %s244, 8
      %s246 = scalar_lea.vmem %s0, %s245
      %p247 = scmp.lt.s32.totalorder %s17, 1
      %s248 = scalar_select %p247, %s17, 1
      %s249 = smul.addr %s248, 8
      %s250 = smul.addr %s249, 8
      %s251 = scalar_lea.vmem %s6, %s250
      %v253 = vld [vmem:[%s246] sm:$0xff]
      %v254 = vld [vmem:[%s246 + $0x8] sm:$0xff]
      %v255 = vld [vmem:[%s246 + $0x10] sm:$0xff]
      %v256 = vld [vmem:[%s246 + $0x18] sm:$0xff]
      %v257 = vld [vmem:[%s246 + $0x20] sm:$0xff]
      %v258 = vld [vmem:[%s246 + $0x28] sm:$0xff]
      %v259 = vld [vmem:[%s246 + $0x30] sm:$0xff]
      %v260 = vld [vmem:[%s246 + $0x38] sm:$0xff]
      %v261 = vld [vmem:[%s1] sm:$0xff]
      %vm262 = vcmask 261120
      %v263 = vsel %vm262, %v253, 0.0
      %264 = vadd.xlane.f32.xlu0 %v263
      %v265 = vpop.xlane.xlu0 %264
      %v266 = vsel %vm262, %v254, 0.0
      %267 = vadd.xlane.f32.xlu0 %v266
      %v268 = vpop.xlane.xlu0 %267
      %v269 = vsel %vm262, %v255, 0.0
      %270 = vadd.xlane.f32.xlu0 %v269
      %v271 = vpop.xlane.xlu0 %270
      %v272 = vsel %vm262, %v256, 0.0
      %273 = vadd.xlane.f32.xlu0 %v272
      %v274 = vpop.xlane.xlu0 %273
      %v275 = vsel %vm262, %v257, 0.0
      %276 = vadd.xlane.f32.xlu0 %v275
      %v277 = vpop.xlane.xlu0 %276
      %v278 = vsel %vm262, %v258, 0.0
      %279 = vadd.xlane.f32.xlu0 %v278
      %v280 = vpop.xlane.xlu0 %279
      %v281 = vsel %vm262, %v259, 0.0
      %282 = vadd.xlane.f32.xlu0 %v281
      %v283 = vpop.xlane.xlu0 %282
      %v284 = vsel %vm262, %v260, 0.0
      %285 = vadd.xlane.f32.xlu0 %v284
      %v286 = vpop.xlane.xlu0 %285
      %v287 = vrcp.pop 32.0
      %v288 = vmul.f32 %v265, %v287
      %v289 = vmul.f32 %v268, %v287
      %v290 = vmul.f32 %v271, %v287
      %v291 = vmul.f32 %v274, %v287
      %v292 = vmul.f32 %v277, %v287
      %v293 = vmul.f32 %v280, %v287
      %v294 = vmul.f32 %v283, %v287
      %v295 = vmul.f32 %v286, %v287
      %v296 = vmul.f32 %v253, %v253
      %v297 = vmul.f32 %v254, %v254
      %v298 = vmul.f32 %v255, %v255
      %v299 = vmul.f32 %v256, %v256
      %v300 = vmul.f32 %v257, %v257
      %v301 = vmul.f32 %v258, %v258
      %v302 = vmul.f32 %v259, %v259
      %v303 = vmul.f32 %v260, %v260
      %v304 = vsel %vm262, %v296, 0.0
      %305 = vadd.xlane.f32.xlu0 %v304
      %v306 = vpop.xlane.xlu0 %305
      %v307 = vsel %vm262, %v297, 0.0
      %308 = vadd.xlane.f32.xlu0 %v307
      %v309 = vpop.xlane.xlu0 %308
      %v310 = vsel %vm262, %v298, 0.0
      %311 = vadd.xlane.f32.xlu0 %v310
      %v312 = vpop.xlane.xlu0 %311
      %v313 = vsel %vm262, %v299, 0.0
      %314 = vadd.xlane.f32.xlu0 %v313
      %v315 = vpop.xlane.xlu0 %314
      %v316 = vsel %vm262, %v300, 0.0
      %317 = vadd.xlane.f32.xlu0 %v316
      %v318 = vpop.xlane.xlu0 %317
      %v319 = vsel %vm262, %v301, 0.0
      %320 = vadd.xlane.f32.xlu0 %v319
      %v321 = vpop.xlane.xlu0 %320
      %v322 = vsel %vm262, %v302, 0.0
      %323 = vadd.xlane.f32.xlu0 %v322
      %v324 = vpop.xlane.xlu0 %323
      %v325 = vsel %vm262, %v303, 0.0
      %326 = vadd.xlane.f32.xlu0 %v325
      %v327 = vpop.xlane.xlu0 %326
      %v328 = vmul.f32 %v306, %v287
      %v329 = vmul.f32 %v309, %v287
      %v330 = vmul.f32 %v312, %v287
      %v331 = vmul.f32 %v315, %v287
      %v332 = vmul.f32 %v318, %v287
      %v333 = vmul.f32 %v321, %v287
      %v334 = vmul.f32 %v324, %v287
      %v335 = vmul.f32 %v327, %v287
      %v336 = vmul.f32 %v288, %v288
      %v337 = vmul.f32 %v289, %v289
      %v338 = vmul.f32 %v290, %v290
      %v339 = vmul.f32 %v291, %v291
      %v340 = vmul.f32 %v292, %v292
      %v341 = vmul.f32 %v293, %v293
      %v342 = vmul.f32 %v294, %v294
      %v343 = vmul.f32 %v295, %v295
      %v344 = vsub.f32 %v328, %v336
      %v345 = vsub.f32 %v329, %v337
      %v346 = vsub.f32 %v330, %v338
      %v347 = vsub.f32 %v331, %v339
      %v348 = vsub.f32 %v332, %v340
      %v349 = vsub.f32 %v333, %v341
      %v350 = vsub.f32 %v334, %v342
      %v351 = vsub.f32 %v335, %v343
      %v352 = vadd.f32 %v344, 1e-05
      %v353 = vadd.f32 %v345, 1e-05
      %v354 = vadd.f32 %v346, 1e-05
      %v355 = vadd.f32 %v347, 1e-05
      %v356 = vadd.f32 %v348, 1e-05
      %v357 = vadd.f32 %v349, 1e-05
      %v358 = vadd.f32 %v350, 1e-05
      %v359 = vadd.f32 %v351, 1e-05
      %v360 = vrsqrt.pop %v352
      %v361 = vrsqrt.pop %v353
      %v362 = vrsqrt.pop %v354
      %v363 = vrsqrt.pop %v355
      %v364 = vrsqrt.pop %v356
      %v365 = vrsqrt.pop %v357
      %v366 = vrsqrt.pop %v358
      %v367 = vrsqrt.pop %v359
      %v368 = vsub.f32 %v253, %v288
      %v369 = vsub.f32 %v254, %v289
      %v370 = vsub.f32 %v255, %v290
      %v371 = vsub.f32 %v256, %v291
      %v372 = vsub.f32 %v257, %v292
      %v373 = vsub.f32 %v258, %v293
      %v374 = vsub.f32 %v259, %v294
      %v375 = vsub.f32 %v260, %v295
      %v376 = vmul.f32 %v368, %v360
      %v377 = vmul.f32 %v369, %v361
      %v378 = vmul.f32 %v370, %v362
      %v379 = vmul.f32 %v371, %v363
      %v380 = vmul.f32 %v372, %v364
      %v381 = vmul.f32 %v373, %v365
      %v382 = vmul.f32 %v374, %v366
      %v383 = vmul.f32 %v375, %v367
      %v384 = vlaneseq
      %v385 = vshrl.u32 %v384, 7
      %v386 = vsub.s32 0, %v385
      %v387 = vrot.slane %v261, %v386
      %v388 = vmul.f32 %v376, %v387
      %v389 = vmul.f32 %v377, %v387
      %v390 = vmul.f32 %v378, %v387
      %v391 = vmul.f32 %v379, %v387
      %v392 = vmul.f32 %v380, %v387
      %v393 = vmul.f32 %v381, %v387
      %v394 = vmul.f32 %v382, %v387
      %v395 = vmul.f32 %v383, %v387
      %v396 = vlaneseq
      %v397 = vshrl.u32 %v396, 7
      %v398 = vsub.s32 1, %v397
      %v399 = vrot.slane %v261, %v398
      %v400 = vadd.f32 %v388, %v399
      %v401 = vadd.f32 %v389, %v399
      %v402 = vadd.f32 %v390, %v399
      %v403 = vadd.f32 %v391, %v399
      %v404 = vadd.f32 %v392, %v399
      %v405 = vadd.f32 %v393, %v399
      %v406 = vadd.f32 %v394, %v399
      %v407 = vadd.f32 %v395, %v399
      %v408 = vpack.c.bf16 %v401, %v400
      %v409 = vpack.c.bf16 %v403, %v402
      %v410 = vpack.c.bf16 %v405, %v404
      %v411 = vpack.c.bf16 %v407, %v406
      %v412 = vld [vmem:[%s3] sm:$0xf]
      %v413 = vld [vmem:[%s3 + $0x4] sm:$0xf]
      %v414 = vld [vmem:[%s3 + $0x8] sm:$0xf]
      %v415 = vld [vmem:[%s3 + $0xc] sm:$0xf]
      %v416 = vld [vmem:[%s2] sm:$0x1]
      %v418 = vlaneseq
      %v419 = vshrl.u32 %v418, 7
      %v420 = vsub.s32 0, %v419
      %v421 = vrot.slane %v416, %v420
      %v427 = vunpack.c.l.b16 %v412
      %v428 = vunpack.c.l.b16 %v413
      %v429 = vunpack.c.l.b16 %v414
      %v430 = vunpack.c.l.b16 %v415
      %v431 = vpack.c.b16 %v428, %v427
      %v432 = vpack.c.b16 %v430, %v429
      %v436 = vsel %vm262, %v408, 0
      %v439 = vsel %vm262, %v409, 0
      %v442 = vsel %vm262, %v410, 0
      %v445 = vsel %vm262, %v411, 0
      %447 = vmatprep.subr.bf16.mxu0 0
      %448 = vmatpush1.bf16.msra.mxu0 %v431
      %449 = vmatprep.subr.bf16.mxu0 0
      %450 = vmatpush1.bf16.msra.mxu0 %v432
      %451 = vmatprep.subr.bf16.mxu0 0
      %452 = vmatpush1.bf16.msra.mxu0 0
      %453 = vmatprep.subr.bf16.mxu0 0
      %454 = vmatpush1.bf16.msra.mxu0 0
      %455 = vmatprep.subr.bf16.mxu0 0
      %456 = vmatpush1.bf16.msra.mxu0 0
      %457 = vmatprep.subr.bf16.mxu0 0
      %458 = vmatpush1.bf16.msra.mxu0 0
      %459 = vmatprep.subr.bf16.mxu0 0
      %460 = vmatpush1.bf16.msra.mxu0 0
      %461 = vmatprep.subr.bf16.mxu0 0
      %462 = vmatpush1.bf16.msra.mxu0 0
      %463 = vmatprep.subr.bf16.mxu0 0
      %464 = vmatpush1.bf16.msra.mxu0 0
      %465 = vmatprep.subr.bf16.mxu0 0
      %466 = vmatpush1.bf16.msra.mxu0 0
      %467 = vmatprep.subr.bf16.mxu0 0
      %468 = vmatpush1.bf16.msra.mxu0 0
      %469 = vmatprep.subr.bf16.mxu0 0
      %470 = vmatpush1.bf16.msra.mxu0 0
      %471 = vmatprep.subr.bf16.mxu0 0
      %472 = vmatpush1.bf16.msra.mxu0 0
      %473 = vmatprep.subr.bf16.mxu0 0
      %474 = vmatpush1.bf16.msra.mxu0 0
      %475 = vmatprep.subr.bf16.mxu0 0
      %476 = vmatpush1.bf16.msra.mxu0 0
      %477 = vmatprep.subr.bf16.mxu0 0
      %478 = vmatpush1.bf16.msra.mxu0 0
      %479 = vmatprep.mubr.bf16.mxu0 0
      %480 = vmatmul.mubr.bf16.gmra.mrb[0].mxu0 %v436
      %v481 = vpop.f32.mrb[0].mxu0
      %v482 = vadd.f32 %v421, %v481
      %v483 = vpop.f32.mrb[0].mxu0
      %v484 = vpop.f32.mrb[0].mxu0
      %v485 = vadd.f32 %v421, %v484
      %v486 = vpop.f32.mrb[0].mxu0
      %487 = vmatprep.mubr.bf16.mxu0 0
      %488 = vmatmul.mubr.bf16.gmra.mrb[0].mxu0 %v439
      %v489 = vpop.f32.mrb[0].mxu0
      %v490 = vadd.f32 %v421, %v489
      %v491 = vpop.f32.mrb[0].mxu0
      %v492 = vpop.f32.mrb[0].mxu0
      %v493 = vadd.f32 %v421, %v492
      %v494 = vpop.f32.mrb[0].mxu0
      %495 = vmatprep.mubr.bf16.mxu0 0
      %496 = vmatmul.mubr.bf16.gmra.mrb[0].mxu0 %v442
      %v497 = vpop.f32.mrb[0].mxu0
      %v498 = vadd.f32 %v421, %v497
      %v499 = vpop.f32.mrb[0].mxu0
      %v500 = vpop.f32.mrb[0].mxu0
      %v501 = vadd.f32 %v421, %v500
      %v502 = vpop.f32.mrb[0].mxu0
      %503 = vmatprep.mubr.bf16.mxu0 0
      %504 = vmatmul.mubr.bf16.gmra.mrb[0].mxu0 %v445
      %v505 = vpop.f32.mrb[0].mxu0
      %v506 = vadd.f32 %v421, %v505
      %v507 = vpop.f32.mrb[0].mxu0
      %v508 = vpop.f32.mrb[0].mxu0
      %v509 = vadd.f32 %v421, %v508
      %v510 = vpop.f32.mrb[0].mxu0
      %511 = vdwg.mxu0
      %520 = vrot.lane.b32.xlu0 %v482, 120
      %v521 = vpop.permute.xlu0 %520
      %522 = vrot.lane.b32.xlu0 %v485, 120
      %v523 = vpop.permute.xlu0 %522
      %524 = vrot.lane.b32.xlu0 %v490, 120
      %v525 = vpop.permute.xlu0 %524
      %526 = vrot.lane.b32.xlu0 %v493, 120
      %v527 = vpop.permute.xlu0 %526
      %528 = vrot.lane.b32.xlu0 %v498, 120
      %v529 = vpop.permute.xlu0 %528
      %530 = vrot.lane.b32.xlu0 %v501, 120
      %v531 = vpop.permute.xlu0 %530
      %532 = vrot.lane.b32.xlu0 %v506, 120
      %v533 = vpop.permute.xlu0 %532
      %534 = vrot.lane.b32.xlu0 %v509, 120
      %v535 = vpop.permute.xlu0 %534
      %544 = vrot.lane.b32.xlu0 %v482, 112
      %v545 = vpop.permute.xlu0 %544
      %546 = vrot.lane.b32.xlu0 %v485, 112
      %v547 = vpop.permute.xlu0 %546
      %548 = vrot.lane.b32.xlu0 %v490, 112
      %v549 = vpop.permute.xlu0 %548
      %550 = vrot.lane.b32.xlu0 %v493, 112
      %v551 = vpop.permute.xlu0 %550
      %552 = vrot.lane.b32.xlu0 %v498, 112
      %v553 = vpop.permute.xlu0 %552
      %554 = vrot.lane.b32.xlu0 %v501, 112
      %v555 = vpop.permute.xlu0 %554
      %556 = vrot.lane.b32.xlu0 %v506, 112
      %v557 = vpop.permute.xlu0 %556
      %558 = vrot.lane.b32.xlu0 %v509, 112
      %v559 = vpop.permute.xlu0 %558
      %568 = vrot.lane.b32.xlu0 %v482, 104
      %v569 = vpop.permute.xlu0 %568
      %570 = vrot.lane.b32.xlu0 %v485, 104
      %v571 = vpop.permute.xlu0 %570
      %572 = vrot.lane.b32.xlu0 %v490, 104
      %v573 = vpop.permute.xlu0 %572
      %574 = vrot.lane.b32.xlu0 %v493, 104
      %v575 = vpop.permute.xlu0 %574
      %576 = vrot.lane.b32.xlu0 %v498, 104
      %v577 = vpop.permute.xlu0 %576
      %578 = vrot.lane.b32.xlu0 %v501, 104
      %v579 = vpop.permute.xlu0 %578
      %580 = vrot.lane.b32.xlu0 %v506, 104
      %v581 = vpop.permute.xlu0 %580
      %582 = vrot.lane.b32.xlu0 %v509, 104
      %v583 = vpop.permute.xlu0 %582
      %v592 = vpack.c.bf16 %v485, %v482
      %v593 = vpack.c.bf16 %v493, %v490
      %v594 = vpack.c.bf16 %v501, %v498
      %v595 = vpack.c.bf16 %v509, %v506
      %v596 = vpack.c.bf16 %v523, %v521
      %v597 = vpack.c.bf16 %v527, %v525
      %v598 = vpack.c.bf16 %v531, %v529
      %v599 = vpack.c.bf16 %v535, %v533
      %v600 = vpack.c.bf16 %v547, %v545
      %v601 = vpack.c.bf16 %v551, %v549
      %v602 = vpack.c.bf16 %v555, %v553
      %v603 = vpack.c.bf16 %v559, %v557
      %v604 = vpack.c.bf16 %v571, %v569
      %v605 = vpack.c.bf16 %v575, %v573
      %v606 = vpack.c.bf16 %v579, %v577
      %v607 = vpack.c.bf16 %v583, %v581
      %612 = vrot.lane.b32.xlu0 %v592, 96
      %v613 = vpop.permute.xlu0 %612
      %614 = vrot.lane.b32.xlu0 %v593, 96
      %v615 = vpop.permute.xlu0 %614
      %616 = vrot.lane.b32.xlu0 %v594, 96
      %v617 = vpop.permute.xlu0 %616
      %618 = vrot.lane.b32.xlu0 %v595, 96
      %v619 = vpop.permute.xlu0 %618
      %vm620 = vcmask 64512
      %v622 = vsel %vm620, %v592, 0
      %v625 = vsel %vm620, %v593, 0
      %v628 = vsel %vm620, %v594, 0
      %v631 = vsel %vm620, %v595, 0
      %v634 = vsel %vm620, %v613, 0
      %v637 = vsel %vm620, %v615, 0
      %v640 = vsel %vm620, %v617, 0
      %v643 = vsel %vm620, %v619, 0
      %645 = vmatprep.subr.bf16.mxu0 0
      %646 = vmatpush1.bf16.xpose.msra.mxu0 %v634
      %647 = vmatprep.subr.bf16.mxu0 0
      %648 = vmatpush1.bf16.xpose.msra.mxu0 %v637
      %649 = vmatprep.subr.bf16.mxu0 0
      %650 = vmatpush1.bf16.xpose.msra.mxu0 %v640
      %651 = vmatprep.subr.bf16.mxu0 0
      %652 = vmatpush1.bf16.xpose.msra.mxu0 %v643
      %653 = vmatprep.subr.bf16.mxu0 0
      %654 = vmatpush1.bf16.xpose.msra.mxu0 0
      %655 = vmatprep.subr.bf16.mxu0 0
      %656 = vmatpush1.bf16.xpose.msra.mxu0 0
      %657 = vmatprep.subr.bf16.mxu0 0
      %658 = vmatpush1.bf16.xpose.msra.mxu0 0
      %659 = vmatprep.subr.bf16.mxu0 0
      %660 = vmatpush1.bf16.xpose.msra.mxu0 0
      %661 = vmatprep.subr.bf16.mxu0 0
      %662 = vmatpush1.bf16.xpose.msra.mxu0 0
      %663 = vmatprep.subr.bf16.mxu0 0
      %664 = vmatpush1.bf16.xpose.msra.mxu0 0
      %665 = vmatprep.subr.bf16.mxu0 0
      %666 = vmatpush1.bf16.xpose.msra.mxu0 0
      %667 = vmatprep.subr.bf16.mxu0 0
      %668 = vmatpush1.bf16.xpose.msra.mxu0 0
      %669 = vmatprep.subr.bf16.mxu0 0
      %670 = vmatpush1.bf16.xpose.msra.mxu0 0
      %671 = vmatprep.subr.bf16.mxu0 0
      %672 = vmatpush1.bf16.xpose.msra.mxu0 0
      %673 = vmatprep.subr.bf16.mxu0 0
      %674 = vmatpush1.bf16.xpose.msra.mxu0 0
      %675 = vmatprep.subr.bf16.mxu0 0
      %676 = vmatpush1.bf16.xpose.msra.mxu0 0
      %677 = vmatprep.mubr.bf16.mxu0 0
      %678 = vmatmul.mubr.bf16.gmra.mrb[0].mxu0 %v622
      %v679 = vpop.f32.mrb[0].mxu0
      %v680 = vadd.f32 0.0, %v679
      %v681 = vpop.f32.mrb[0].mxu0
      %v682 = vpop.f32.mrb[0].mxu0
      %v683 = vadd.f32 0.0, %v682
      %v684 = vpop.f32.mrb[0].mxu0
      %685 = vmatprep.mubr.bf16.mxu0 0
      %686 = vmatmul.mubr.bf16.gmra.mrb[0].mxu0 %v625
      %v687 = vpop.f32.mrb[0].mxu0
      %v688 = vadd.f32 0.0, %v687
      %v689 = vpop.f32.mrb[0].mxu0
      %v690 = vpop.f32.mrb[0].mxu0
      %v691 = vadd.f32 0.0, %v690
      %v692 = vpop.f32.mrb[0].mxu0
      %693 = vmatprep.mubr.bf16.mxu0 0
      %694 = vmatmul.mubr.bf16.gmra.mrb[0].mxu0 %v628
      %v695 = vpop.f32.mrb[0].mxu0
      %v696 = vadd.f32 0.0, %v695
      %v697 = vpop.f32.mrb[0].mxu0
      %v698 = vpop.f32.mrb[0].mxu0
      %v699 = vadd.f32 0.0, %v698
      %v700 = vpop.f32.mrb[0].mxu0
      %701 = vmatprep.mubr.bf16.mxu0 0
      %702 = vmatmul.mubr.bf16.gmra.mrb[0].mxu0 %v631
      %v703 = vpop.f32.mrb[0].mxu0
      %v704 = vadd.f32 0.0, %v703
      %v705 = vpop.f32.mrb[0].mxu0
      %v706 = vpop.f32.mrb[0].mxu0
      %v707 = vadd.f32 0.0, %v706
      %v708 = vpop.f32.mrb[0].mxu0
      %709 = vdwg.mxu0
      %714 = vrot.lane.b32.xlu0 %v596, 96
      %v715 = vpop.permute.xlu0 %714
      %716 = vrot.lane.b32.xlu0 %v597, 96
      %v717 = vpop.permute.xlu0 %716
      %718 = vrot.lane.b32.xlu0 %v598, 96
      %v719 = vpop.permute.xlu0 %718
      %720 = vrot.lane.b32.xlu0 %v599, 96
      %v721 = vpop.permute.xlu0 %720
      %v723 = vsel %vm620, %v596, 0
      %v726 = vsel %vm620, %v597, 0
      %v729 = vsel %vm620, %v598, 0
      %v732 = vsel %vm620, %v599, 0
      %v735 = vsel %vm620, %v715, 0
      %v738 = vsel %vm620, %v717, 0
      %v741 = vsel %vm620, %v719, 0
      %v744 = vsel %vm620, %v721, 0
      %746 = vmatprep.subr.bf16.mxu0 0
      %747 = vmatpush1.bf16.xpose.msra.mxu0 %v735
      %748 = vmatprep.subr.bf16.mxu0 0
      %749 = vmatpush1.bf16.xpose.msra.mxu0 %v738
      %750 = vmatprep.subr.bf16.mxu0 0
      %751 = vmatpush1.bf16.xpose.msra.mxu0 %v741
      %752 = vmatprep.subr.bf16.mxu0 0
      %753 = vmatpush1.bf16.xpose.msra.mxu0 %v744
      %754 = vmatprep.subr.bf16.mxu0 0
      %755 = vmatpush1.bf16.xpose.msra.mxu0 0
      %756 = vmatprep.subr.bf16.mxu0 0
      %757 = vmatpush1.bf16.xpose.msra.mxu0 0
      %758 = vmatprep.subr.bf16.mxu0 0
      %759 = vmatpush1.bf16.xpose.msra.mxu0 0
      %760 = vmatprep.subr.bf16.mxu0 0
      %761 = vmatpush1.bf16.xpose.msra.mxu0 0
      %762 = vmatprep.subr.bf16.mxu0 0
      %763 = vmatpush1.bf16.xpose.msra.mxu0 0
      %764 = vmatprep.subr.bf16.mxu0 0
      %765 = vmatpush1.bf16.xpose.msra.mxu0 0
      %766 = vmatprep.subr.bf16.mxu0 0
      %767 = vmatpush1.bf16.xpose.msra.mxu0 0
      %768 = vmatprep.subr.bf16.mxu0 0
      %769 = vmatpush1.bf16.xpose.msra.mxu0 0
      %770 = vmatprep.subr.bf16.mxu0 0
      %771 = vmatpush1.bf16.xpose.msra.mxu0 0
      %772 = vmatprep.subr.bf16.mxu0 0
      %773 = vmatpush1.bf16.xpose.msra.mxu0 0
      %774 = vmatprep.subr.bf16.mxu0 0
      %775 = vmatpush1.bf16.xpose.msra.mxu0 0
      %776 = vmatprep.subr.bf16.mxu0 0
      %777 = vmatpush1.bf16.xpose.msra.mxu0 0
      %778 = vmatprep.mubr.bf16.mxu0 0
      %779 = vmatmul.mubr.bf16.gmra.mrb[0].mxu0 %v723
      %v780 = vpop.f32.mrb[0].mxu0
      %v781 = vadd.f32 0.0, %v780
      %v782 = vpop.f32.mrb[0].mxu0
      %v783 = vpop.f32.mrb[0].mxu0
      %v784 = vadd.f32 0.0, %v783
      %v785 = vpop.f32.mrb[0].mxu0
      %786 = vmatprep.mubr.bf16.mxu0 0
      %787 = vmatmul.mubr.bf16.gmra.mrb[0].mxu0 %v726
      %v788 = vpop.f32.mrb[0].mxu0
      %v789 = vadd.f32 0.0, %v788
      %v790 = vpop.f32.mrb[0].mxu0
      %v791 = vpop.f32.mrb[0].mxu0
      %v792 = vadd.f32 0.0, %v791
      %v793 = vpop.f32.mrb[0].mxu0
      %794 = vmatprep.mubr.bf16.mxu0 0
      %795 = vmatmul.mubr.bf16.gmra.mrb[0].mxu0 %v729
      %v796 = vpop.f32.mrb[0].mxu0
      %v797 = vadd.f32 0.0, %v796
      %v798 = vpop.f32.mrb[0].mxu0
      %v799 = vpop.f32.mrb[0].mxu0
      %v800 = vadd.f32 0.0, %v799
      %v801 = vpop.f32.mrb[0].mxu0
      %802 = vmatprep.mubr.bf16.mxu0 0
      %803 = vmatmul.mubr.bf16.gmra.mrb[0].mxu0 %v732
      %v804 = vpop.f32.mrb[0].mxu0
      %v805 = vadd.f32 0.0, %v804
      %v806 = vpop.f32.mrb[0].mxu0
      %v807 = vpop.f32.mrb[0].mxu0
      %v808 = vadd.f32 0.0, %v807
      %v809 = vpop.f32.mrb[0].mxu0
      %810 = vdwg.mxu0
      %815 = vrot.lane.b32.xlu0 %v600, 96
      %v816 = vpop.permute.xlu0 %815
      %817 = vrot.lane.b32.xlu0 %v601, 96
      %v818 = vpop.permute.xlu0 %817
      %819 = vrot.lane.b32.xlu0 %v602, 96
      %v820 = vpop.permute.xlu0 %819
      %821 = vrot.lane.b32.xlu0 %v603, 96
      %v822 = vpop.permute.xlu0 %821
      %v824 = vsel %vm620, %v600, 0
      %v827 = vsel %vm620, %v601, 0
      %v830 = vsel %vm620, %v602, 0
      %v833 = vsel %vm620, %v603, 0
      %v836 = vsel %vm620, %v816, 0
      %v839 = vsel %vm620, %v818, 0
      %v842 = vsel %vm620, %v820, 0
      %v845 = vsel %vm620, %v822, 0
      %847 = vmatprep.subr.bf16.mxu0 0
      %848 = vmatpush1.bf16.xpose.msra.mxu0 %v836
      %849 = vmatprep.subr.bf16.mxu0 0
      %850 = vmatpush1.bf16.xpose.msra.mxu0 %v839
      %851 = vmatprep.subr.bf16.mxu0 0
      %852 = vmatpush1.bf16.xpose.msra.mxu0 %v842
      %853 = vmatprep.subr.bf16.mxu0 0
      %854 = vmatpush1.bf16.xpose.msra.mxu0 %v845
      %855 = vmatprep.subr.bf16.mxu0 0
      %856 = vmatpush1.bf16.xpose.msra.mxu0 0
      %857 = vmatprep.subr.bf16.mxu0 0
      %858 = vmatpush1.bf16.xpose.msra.mxu0 0
      %859 = vmatprep.subr.bf16.mxu0 0
      %860 = vmatpush1.bf16.xpose.msra.mxu0 0
      %861 = vmatprep.subr.bf16.mxu0 0
      %862 = vmatpush1.bf16.xpose.msra.mxu0 0
      %863 = vmatprep.subr.bf16.mxu0 0
      %864 = vmatpush1.bf16.xpose.msra.mxu0 0
      %865 = vmatprep.subr.bf16.mxu0 0
      %866 = vmatpush1.bf16.xpose.msra.mxu0 0
      %867 = vmatprep.subr.bf16.mxu0 0
      %868 = vmatpush1.bf16.xpose.msra.mxu0 0
      %869 = vmatprep.subr.bf16.mxu0 0
      %870 = vmatpush1.bf16.xpose.msra.mxu0 0
      %871 = vmatprep.subr.bf16.mxu0 0
      %872 = vmatpush1.bf16.xpose.msra.mxu0 0
      %873 = vmatprep.subr.bf16.mxu0 0
      %874 = vmatpush1.bf16.xpose.msra.mxu0 0
      %875 = vmatprep.subr.bf16.mxu0 0
      %876 = vmatpush1.bf16.xpose.msra.mxu0 0
      %877 = vmatprep.subr.bf16.mxu0 0
      %878 = vmatpush1.bf16.xpose.msra.mxu0 0
      %879 = vmatprep.mubr.bf16.mxu0 0
      %880 = vmatmul.mubr.bf16.gmra.mrb[0].mxu0 %v824
      %v881 = vpop.f32.mrb[0].mxu0
      %v882 = vadd.f32 0.0, %v881
      %v883 = vpop.f32.mrb[0].mxu0
      %v884 = vpop.f32.mrb[0].mxu0
      %v885 = vadd.f32 0.0, %v884
      %v886 = vpop.f32.mrb[0].mxu0
      %887 = vmatprep.mubr.bf16.mxu0 0
      %888 = vmatmul.mubr.bf16.gmra.mrb[0].mxu0 %v827
      %v889 = vpop.f32.mrb[0].mxu0
      %v890 = vadd.f32 0.0, %v889
      %v891 = vpop.f32.mrb[0].mxu0
      %v892 = vpop.f32.mrb[0].mxu0
      %v893 = vadd.f32 0.0, %v892
      %v894 = vpop.f32.mrb[0].mxu0
      %895 = vmatprep.mubr.bf16.mxu0 0
      %896 = vmatmul.mubr.bf16.gmra.mrb[0].mxu0 %v830
      %v897 = vpop.f32.mrb[0].mxu0
      %v898 = vadd.f32 0.0, %v897
      %v899 = vpop.f32.mrb[0].mxu0
      %v900 = vpop.f32.mrb[0].mxu0
      %v901 = vadd.f32 0.0, %v900
      %v902 = vpop.f32.mrb[0].mxu0
      %903 = vmatprep.mubr.bf16.mxu0 0
      %904 = vmatmul.mubr.bf16.gmra.mrb[0].mxu0 %v833
      %v905 = vpop.f32.mrb[0].mxu0
      %v906 = vadd.f32 0.0, %v905
      %v907 = vpop.f32.mrb[0].mxu0
      %v908 = vpop.f32.mrb[0].mxu0
      %v909 = vadd.f32 0.0, %v908
      %v910 = vpop.f32.mrb[0].mxu0
      %911 = vdwg.mxu0
      %916 = vrot.lane.b32.xlu0 %v604, 96
      %v917 = vpop.permute.xlu0 %916
      %918 = vrot.lane.b32.xlu0 %v605, 96
      %v919 = vpop.permute.xlu0 %918
      %920 = vrot.lane.b32.xlu0 %v606, 96
      %v921 = vpop.permute.xlu0 %920
      %922 = vrot.lane.b32.xlu0 %v607, 96
      %v923 = vpop.permute.xlu0 %922
      %v925 = vsel %vm620, %v604, 0
      %v928 = vsel %vm620, %v605, 0
      %v931 = vsel %vm620, %v606, 0
      %v934 = vsel %vm620, %v607, 0
      %v937 = vsel %vm620, %v917, 0
      %v940 = vsel %vm620, %v919, 0
      %v943 = vsel %vm620, %v921, 0
      %v946 = vsel %vm620, %v923, 0
      %948 = vmatprep.subr.bf16.mxu0 0
      %949 = vmatpush1.bf16.xpose.msra.mxu0 %v937
      %950 = vmatprep.subr.bf16.mxu0 0
      %951 = vmatpush1.bf16.xpose.msra.mxu0 %v940
      %952 = vmatprep.subr.bf16.mxu0 0
      %953 = vmatpush1.bf16.xpose.msra.mxu0 %v943
      %954 = vmatprep.subr.bf16.mxu0 0
      %955 = vmatpush1.bf16.xpose.msra.mxu0 %v946
      %956 = vmatprep.subr.bf16.mxu0 0
      %957 = vmatpush1.bf16.xpose.msra.mxu0 0
      %958 = vmatprep.subr.bf16.mxu0 0
      %959 = vmatpush1.bf16.xpose.msra.mxu0 0
      %960 = vmatprep.subr.bf16.mxu0 0
      %961 = vmatpush1.bf16.xpose.msra.mxu0 0
      %962 = vmatprep.subr.bf16.mxu0 0
      %963 = vmatpush1.bf16.xpose.msra.mxu0 0
      %964 = vmatprep.subr.bf16.mxu0 0
      %965 = vmatpush1.bf16.xpose.msra.mxu0 0
      %966 = vmatprep.subr.bf16.mxu0 0
      %967 = vmatpush1.bf16.xpose.msra.mxu0 0
      %968 = vmatprep.subr.bf16.mxu0 0
      %969 = vmatpush1.bf16.xpose.msra.mxu0 0
      %970 = vmatprep.subr.bf16.mxu0 0
      %971 = vmatpush1.bf16.xpose.msra.mxu0 0
      %972 = vmatprep.subr.bf16.mxu0 0
      %973 = vmatpush1.bf16.xpose.msra.mxu0 0
      %974 = vmatprep.subr.bf16.mxu0 0
      %975 = vmatpush1.bf16.xpose.msra.mxu0 0
      %976 = vmatprep.subr.bf16.mxu0 0
      %977 = vmatpush1.bf16.xpose.msra.mxu0 0
      %978 = vmatprep.subr.bf16.mxu0 0
      %979 = vmatpush1.bf16.xpose.msra.mxu0 0
      %980 = vmatprep.mubr.bf16.mxu0 0
      %981 = vmatmul.mubr.bf16.gmra.mrb[0].mxu0 %v925
      %v982 = vpop.f32.mrb[0].mxu0
      %v983 = vadd.f32 0.0, %v982
      %v984 = vpop.f32.mrb[0].mxu0
      %v985 = vpop.f32.mrb[0].mxu0
      %v986 = vadd.f32 0.0, %v985
      %v987 = vpop.f32.mrb[0].mxu0
      %988 = vmatprep.mubr.bf16.mxu0 0
      %989 = vmatmul.mubr.bf16.gmra.mrb[0].mxu0 %v928
      %v990 = vpop.f32.mrb[0].mxu0
      %v991 = vadd.f32 0.0, %v990
      %v992 = vpop.f32.mrb[0].mxu0
      %v993 = vpop.f32.mrb[0].mxu0
      %v994 = vadd.f32 0.0, %v993
      %v995 = vpop.f32.mrb[0].mxu0
      %996 = vmatprep.mubr.bf16.mxu0 0
      %997 = vmatmul.mubr.bf16.gmra.mrb[0].mxu0 %v931
      %v998 = vpop.f32.mrb[0].mxu0
      %v999 = vadd.f32 0.0, %v998
      %v1000 = vpop.f32.mrb[0].mxu0
      %v1001 = vpop.f32.mrb[0].mxu0
      %v1002 = vadd.f32 0.0, %v1001
      %v1003 = vpop.f32.mrb[0].mxu0
      %1004 = vmatprep.mubr.bf16.mxu0 0
      %1005 = vmatmul.mubr.bf16.gmra.mrb[0].mxu0 %v934
      %v1006 = vpop.f32.mrb[0].mxu0
      %v1007 = vadd.f32 0.0, %v1006
      %v1008 = vpop.f32.mrb[0].mxu0
      %v1009 = vpop.f32.mrb[0].mxu0
      %v1010 = vadd.f32 0.0, %v1009
      %v1011 = vpop.f32.mrb[0].mxu0
      %1012 = vdwg.mxu0
      %vm1013 = vcmask 523264
      %v1014 = vsel %vm1013, %v680, -inf
      %1015 = vmax.xlane.f32.xlu0 %v1014
      %v1016 = vpop.xlane.xlu0 %1015
      %v1017 = vsel %vm1013, %v683, -inf
      %1018 = vmax.xlane.f32.xlu0 %v1017
      %v1019 = vpop.xlane.xlu0 %1018
      %v1020 = vsel %vm1013, %v688, -inf
      %1021 = vmax.xlane.f32.xlu0 %v1020
      %v1022 = vpop.xlane.xlu0 %1021
      %v1023 = vsel %vm1013, %v691, -inf
      %1024 = vmax.xlane.f32.xlu0 %v1023
      %v1025 = vpop.xlane.xlu0 %1024
      %v1026 = vsel %vm1013, %v696, -inf
      %1027 = vmax.xlane.f32.xlu0 %v1026
      %v1028 = vpop.xlane.xlu0 %1027
      %v1029 = vsel %vm1013, %v699, -inf
      %1030 = vmax.xlane.f32.xlu0 %v1029
      %v1031 = vpop.xlane.xlu0 %1030
      %v1032 = vsel %vm1013, %v704, -inf
      %1033 = vmax.xlane.f32.xlu0 %v1032
      %v1034 = vpop.xlane.xlu0 %1033
      %v1035 = vsel %vm1013, %v707, -inf
      %1036 = vmax.xlane.f32.xlu0 %v1035
      %v1037 = vpop.xlane.xlu0 %1036
      %v1038 = vsel %vm1013, %v781, -inf
      %1039 = vmax.xlane.f32.xlu0 %v1038
      %v1040 = vpop.xlane.xlu0 %1039
      %v1041 = vsel %vm1013, %v784, -inf
      %1042 = vmax.xlane.f32.xlu0 %v1041
      %v1043 = vpop.xlane.xlu0 %1042
      %v1044 = vsel %vm1013, %v789, -inf
      %1045 = vmax.xlane.f32.xlu0 %v1044
      %v1046 = vpop.xlane.xlu0 %1045
      %v1047 = vsel %vm1013, %v792, -inf
      %1048 = vmax.xlane.f32.xlu0 %v1047
      %v1049 = vpop.xlane.xlu0 %1048
      %v1050 = vsel %vm1013, %v797, -inf
      %1051 = vmax.xlane.f32.xlu0 %v1050
      %v1052 = vpop.xlane.xlu0 %1051
      %v1053 = vsel %vm1013, %v800, -inf
      %1054 = vmax.xlane.f32.xlu0 %v1053
      %v1055 = vpop.xlane.xlu0 %1054
      %v1056 = vsel %vm1013, %v805, -inf
      %1057 = vmax.xlane.f32.xlu0 %v1056
      %v1058 = vpop.xlane.xlu0 %1057
      %v1059 = vsel %vm1013, %v808, -inf
      %1060 = vmax.xlane.f32.xlu0 %v1059
      %v1061 = vpop.xlane.xlu0 %1060
      %v1062 = vsel %vm1013, %v882, -inf
      %1063 = vmax.xlane.f32.xlu0 %v1062
      %v1064 = vpop.xlane.xlu0 %1063
      %v1065 = vsel %vm1013, %v885, -inf
      %1066 = vmax.xlane.f32.xlu0 %v1065
      %v1067 = vpop.xlane.xlu0 %1066
      %v1068 = vsel %vm1013, %v890, -inf
      %1069 = vmax.xlane.f32.xlu0 %v1068
      %v1070 = vpop.xlane.xlu0 %1069
      %v1071 = vsel %vm1013, %v893, -inf
      %1072 = vmax.xlane.f32.xlu0 %v1071
      %v1073 = vpop.xlane.xlu0 %1072
      %v1074 = vsel %vm1013, %v898, -inf
      %1075 = vmax.xlane.f32.xlu0 %v1074
      %v1076 = vpop.xlane.xlu0 %1075
      %v1077 = vsel %vm1013, %v901, -inf
      %1078 = vmax.xlane.f32.xlu0 %v1077
      %v1079 = vpop.xlane.xlu0 %1078
      %v1080 = vsel %vm1013, %v906, -inf
      %1081 = vmax.xlane.f32.xlu0 %v1080
      %v1082 = vpop.xlane.xlu0 %1081
      %v1083 = vsel %vm1013, %v909, -inf
      %1084 = vmax.xlane.f32.xlu0 %v1083
      %v1085 = vpop.xlane.xlu0 %1084
      %v1086 = vsel %vm1013, %v983, -inf
      %1087 = vmax.xlane.f32.xlu0 %v1086
      %v1088 = vpop.xlane.xlu0 %1087
      %v1089 = vsel %vm1013, %v986, -inf
      %1090 = vmax.xlane.f32.xlu0 %v1089
      %v1091 = vpop.xlane.xlu0 %1090
      %v1092 = vsel %vm1013, %v991, -inf
      %1093 = vmax.xlane.f32.xlu0 %v1092
      %v1094 = vpop.xlane.xlu0 %1093
      %v1095 = vsel %vm1013, %v994, -inf
      %1096 = vmax.xlane.f32.xlu0 %v1095
      %v1097 = vpop.xlane.xlu0 %1096
      %v1098 = vsel %vm1013, %v999, -inf
      %1099 = vmax.xlane.f32.xlu0 %v1098
      %v1100 = vpop.xlane.xlu0 %1099
      %v1101 = vsel %vm1013, %v1002, -inf
      %1102 = vmax.xlane.f32.xlu0 %v1101
      %v1103 = vpop.xlane.xlu0 %1102
      %v1104 = vsel %vm1013, %v1007, -inf
      %1105 = vmax.xlane.f32.xlu0 %v1104
      %v1106 = vpop.xlane.xlu0 %1105
      %v1107 = vsel %vm1013, %v1010, -inf
      %1108 = vmax.xlane.f32.xlu0 %v1107
      %v1109 = vpop.xlane.xlu0 %1108
      %v1110 = vsub.f32 %v680, %v1016
      %v1111 = vsub.f32 %v683, %v1019
      %v1112 = vsub.f32 %v688, %v1022
      %v1113 = vsub.f32 %v691, %v1025
      %v1114 = vsub.f32 %v696, %v1028
      %v1115 = vsub.f32 %v699, %v1031
      %v1116 = vsub.f32 %v704, %v1034
      %v1117 = vsub.f32 %v707, %v1037
      %v1118 = vsub.f32 %v781, %v1040
      %v1119 = vsub.f32 %v784, %v1043
      %v1120 = vsub.f32 %v789, %v1046
      %v1121 = vsub.f32 %v792, %v1049
      %v1122 = vsub.f32 %v797, %v1052
      %v1123 = vsub.f32 %v800, %v1055
      %v1124 = vsub.f32 %v805, %v1058
      %v1125 = vsub.f32 %v808, %v1061
      %v1126 = vsub.f32 %v882, %v1064
      %v1127 = vsub.f32 %v885, %v1067
      %v1128 = vsub.f32 %v890, %v1070
      %v1129 = vsub.f32 %v893, %v1073
      %v1130 = vsub.f32 %v898, %v1076
      %v1131 = vsub.f32 %v901, %v1079
      %v1132 = vsub.f32 %v906, %v1082
      %v1133 = vsub.f32 %v909, %v1085
      %v1134 = vsub.f32 %v983, %v1088
      %v1135 = vsub.f32 %v986, %v1091
      %v1136 = vsub.f32 %v991, %v1094
      %v1137 = vsub.f32 %v994, %v1097
      %v1138 = vsub.f32 %v999, %v1100
      %v1139 = vsub.f32 %v1002, %v1103
      %v1140 = vsub.f32 %v1007, %v1106
      %v1141 = vsub.f32 %v1010, %v1109
      %v1142 = vmul.f32 %v1110, 1.442695
      %v1143 = vpow.pop %v1142
      %v1144 = vmul.f32 %v1111, 1.442695
      %v1145 = vpow.pop %v1144
      %v1146 = vmul.f32 %v1112, 1.442695
      %v1147 = vpow.pop %v1146
      %v1148 = vmul.f32 %v1113, 1.442695
      %v1149 = vpow.pop %v1148
      %v1150 = vmul.f32 %v1114, 1.442695
      %v1151 = vpow.pop %v1150
      %v1152 = vmul.f32 %v1115, 1.442695
      %v1153 = vpow.pop %v1152
      %v1154 = vmul.f32 %v1116, 1.442695
      %v1155 = vpow.pop %v1154
      %v1156 = vmul.f32 %v1117, 1.442695
      %v1157 = vpow.pop %v1156
      %v1158 = vmul.f32 %v1118, 1.442695
      %v1159 = vpow.pop %v1158
      %v1160 = vmul.f32 %v1119, 1.442695
      %v1161 = vpow.pop %v1160
      %v1162 = vmul.f32 %v1120, 1.442695
      %v1163 = vpow.pop %v1162
      %v1164 = vmul.f32 %v1121, 1.442695
      %v1165 = vpow.pop %v1164
      %v1166 = vmul.f32 %v1122, 1.442695
      %v1167 = vpow.pop %v1166
      %v1168 = vmul.f32 %v1123, 1.442695
      %v1169 = vpow.pop %v1168
      %v1170 = vmul.f32 %v1124, 1.442695
      %v1171 = vpow.pop %v1170
      %v1172 = vmul.f32 %v1125, 1.442695
      %v1173 = vpow.pop %v1172
      %v1174 = vmul.f32 %v1126, 1.442695
      %v1175 = vpow.pop %v1174
      %v1176 = vmul.f32 %v1127, 1.442695
      %v1177 = vpow.pop %v1176
      %v1178 = vmul.f32 %v1128, 1.442695
      %v1179 = vpow.pop %v1178
      %v1180 = vmul.f32 %v1129, 1.442695
      %v1181 = vpow.pop %v1180
      %v1182 = vmul.f32 %v1130, 1.442695
      %v1183 = vpow.pop %v1182
      %v1184 = vmul.f32 %v1131, 1.442695
      %v1185 = vpow.pop %v1184
      %v1186 = vmul.f32 %v1132, 1.442695
      %v1187 = vpow.pop %v1186
      %v1188 = vmul.f32 %v1133, 1.442695
      %v1189 = vpow.pop %v1188
      %v1190 = vmul.f32 %v1134, 1.442695
      %v1191 = vpow.pop %v1190
      %v1192 = vmul.f32 %v1135, 1.442695
      %v1193 = vpow.pop %v1192
      %v1194 = vmul.f32 %v1136, 1.442695
      %v1195 = vpow.pop %v1194
      %v1196 = vmul.f32 %v1137, 1.442695
      %v1197 = vpow.pop %v1196
      %v1198 = vmul.f32 %v1138, 1.442695
      %v1199 = vpow.pop %v1198
      %v1200 = vmul.f32 %v1139, 1.442695
      %v1201 = vpow.pop %v1200
      %v1202 = vmul.f32 %v1140, 1.442695
      %v1203 = vpow.pop %v1202
      %v1204 = vmul.f32 %v1141, 1.442695
      %v1205 = vpow.pop %v1204
      %v1206 = vsel %vm1013, %v1143, 0.0
      %1207 = vadd.xlane.f32.xlu0 %v1206
      %v1208 = vpop.xlane.xlu0 %1207
      %v1209 = vsel %vm1013, %v1145, 0.0
      %1210 = vadd.xlane.f32.xlu0 %v1209
      %v1211 = vpop.xlane.xlu0 %1210
      %v1212 = vsel %vm1013, %v1147, 0.0
      %1213 = vadd.xlane.f32.xlu0 %v1212
      %v1214 = vpop.xlane.xlu0 %1213
      %v1215 = vsel %vm1013, %v1149, 0.0
      %1216 = vadd.xlane.f32.xlu0 %v1215
      %v1217 = vpop.xlane.xlu0 %1216
      %v1218 = vsel %vm1013, %v1151, 0.0
      %1219 = vadd.xlane.f32.xlu0 %v1218
      %v1220 = vpop.xlane.xlu0 %1219
      %v1221 = vsel %vm1013, %v1153, 0.0
      %1222 = vadd.xlane.f32.xlu0 %v1221
      %v1223 = vpop.xlane.xlu0 %1222
      %v1224 = vsel %vm1013, %v1155, 0.0
      %1225 = vadd.xlane.f32.xlu0 %v1224
      %v1226 = vpop.xlane.xlu0 %1225
      %v1227 = vsel %vm1013, %v1157, 0.0
      %1228 = vadd.xlane.f32.xlu0 %v1227
      %v1229 = vpop.xlane.xlu0 %1228
      %v1230 = vsel %vm1013, %v1159, 0.0
      %1231 = vadd.xlane.f32.xlu0 %v1230
      %v1232 = vpop.xlane.xlu0 %1231
      %v1233 = vsel %vm1013, %v1161, 0.0
      %1234 = vadd.xlane.f32.xlu0 %v1233
      %v1235 = vpop.xlane.xlu0 %1234
      %v1236 = vsel %vm1013, %v1163, 0.0
      %1237 = vadd.xlane.f32.xlu0 %v1236
      %v1238 = vpop.xlane.xlu0 %1237
      %v1239 = vsel %vm1013, %v1165, 0.0
      %1240 = vadd.xlane.f32.xlu0 %v1239
      %v1241 = vpop.xlane.xlu0 %1240
      %v1242 = vsel %vm1013, %v1167, 0.0
      %1243 = vadd.xlane.f32.xlu0 %v1242
      %v1244 = vpop.xlane.xlu0 %1243
      %v1245 = vsel %vm1013, %v1169, 0.0
      %1246 = vadd.xlane.f32.xlu0 %v1245
      %v1247 = vpop.xlane.xlu0 %1246
      %v1248 = vsel %vm1013, %v1171, 0.0
      %1249 = vadd.xlane.f32.xlu0 %v1248
      %v1250 = vpop.xlane.xlu0 %1249
      %v1251 = vsel %vm1013, %v1173, 0.0
      %1252 = vadd.xlane.f32.xlu0 %v1251
      %v1253 = vpop.xlane.xlu0 %1252
      %v1254 = vsel %vm1013, %v1175, 0.0
      %1255 = vadd.xlane.f32.xlu0 %v1254
      %v1256 = vpop.xlane.xlu0 %1255
      %v1257 = vsel %vm1013, %v1177, 0.0
      %1258 = vadd.xlane.f32.xlu0 %v1257
      %v1259 = vpop.xlane.xlu0 %1258
      %v1260 = vsel %vm1013, %v1179, 0.0
      %1261 = vadd.xlane.f32.xlu0 %v1260
      %v1262 = vpop.xlane.xlu0 %1261
      %v1263 = vsel %vm1013, %v1181, 0.0
      %1264 = vadd.xlane.f32.xlu0 %v1263
      %v1265 = vpop.xlane.xlu0 %1264
      %v1266 = vsel %vm1013, %v1183, 0.0
      %1267 = vadd.xlane.f32.xlu0 %v1266
      %v1268 = vpop.xlane.xlu0 %1267
      %v1269 = vsel %vm1013, %v1185, 0.0
      %1270 = vadd.xlane.f32.xlu0 %v1269
      %v1271 = vpop.xlane.xlu0 %1270
      %v1272 = vsel %vm1013, %v1187, 0.0
      %1273 = vadd.xlane.f32.xlu0 %v1272
      %v1274 = vpop.xlane.xlu0 %1273
      %v1275 = vsel %vm1013, %v1189, 0.0
      %1276 = vadd.xlane.f32.xlu0 %v1275
      %v1277 = vpop.xlane.xlu0 %1276
      %v1278 = vsel %vm1013, %v1191, 0.0
      %1279 = vadd.xlane.f32.xlu0 %v1278
      %v1280 = vpop.xlane.xlu0 %1279
      %v1281 = vsel %vm1013, %v1193, 0.0
      %1282 = vadd.xlane.f32.xlu0 %v1281
      %v1283 = vpop.xlane.xlu0 %1282
      %v1284 = vsel %vm1013, %v1195, 0.0
      %1285 = vadd.xlane.f32.xlu0 %v1284
      %v1286 = vpop.xlane.xlu0 %1285
      %v1287 = vsel %vm1013, %v1197, 0.0
      %1288 = vadd.xlane.f32.xlu0 %v1287
      %v1289 = vpop.xlane.xlu0 %1288
      %v1290 = vsel %vm1013, %v1199, 0.0
      %1291 = vadd.xlane.f32.xlu0 %v1290
      %v1292 = vpop.xlane.xlu0 %1291
      %v1293 = vsel %vm1013, %v1201, 0.0
      %1294 = vadd.xlane.f32.xlu0 %v1293
      %v1295 = vpop.xlane.xlu0 %1294
      %v1296 = vsel %vm1013, %v1203, 0.0
      %1297 = vadd.xlane.f32.xlu0 %v1296
      %v1298 = vpop.xlane.xlu0 %1297
      %v1299 = vsel %vm1013, %v1205, 0.0
      %1300 = vadd.xlane.f32.xlu0 %v1299
      %v1301 = vpop.xlane.xlu0 %1300
      %v1302 = vrcp.pop %v1208
      %v1303 = vrcp.pop %v1211
      %v1304 = vrcp.pop %v1214
      %v1305 = vrcp.pop %v1217
      %v1306 = vrcp.pop %v1220
      %v1307 = vrcp.pop %v1223
      %v1308 = vrcp.pop %v1226
      %v1309 = vrcp.pop %v1229
      %v1310 = vrcp.pop %v1232
      %v1311 = vrcp.pop %v1235
      %v1312 = vrcp.pop %v1238
      %v1313 = vrcp.pop %v1241
      %v1314 = vrcp.pop %v1244
      %v1315 = vrcp.pop %v1247
      %v1316 = vrcp.pop %v1250
      %v1317 = vrcp.pop %v1253
      %v1318 = vrcp.pop %v1256
      %v1319 = vrcp.pop %v1259
      %v1320 = vrcp.pop %v1262
      %v1321 = vrcp.pop %v1265
      %v1322 = vrcp.pop %v1268
      %v1323 = vrcp.pop %v1271
      %v1324 = vrcp.pop %v1274
      %v1325 = vrcp.pop %v1277
      %v1326 = vrcp.pop %v1280
      %v1327 = vrcp.pop %v1283
      %v1328 = vrcp.pop %v1286
      %v1329 = vrcp.pop %v1289
      %v1330 = vrcp.pop %v1292
      %v1331 = vrcp.pop %v1295
      %v1332 = vrcp.pop %v1298
      %v1333 = vrcp.pop %v1301
      %v1334 = vmul.f32 %v1208, %v1302
      %v1335 = vmul.f32 %v1211, %v1303
      %v1336 = vmul.f32 %v1214, %v1304
      %v1337 = vmul.f32 %v1217, %v1305
      %v1338 = vmul.f32 %v1220, %v1306
      %v1339 = vmul.f32 %v1223, %v1307
      %v1340 = vmul.f32 %v1226, %v1308
      %v1341 = vmul.f32 %v1229, %v1309
      %v1342 = vmul.f32 %v1232, %v1310
      %v1343 = vmul.f32 %v1235, %v1311
      %v1344 = vmul.f32 %v1238, %v1312
      %v1345 = vmul.f32 %v1241, %v1313
      %v1346 = vmul.f32 %v1244, %v1314
      %v1347 = vmul.f32 %v1247, %v1315
      %v1348 = vmul.f32 %v1250, %v1316
      %v1349 = vmul.f32 %v1253, %v1317
      %v1350 = vmul.f32 %v1256, %v1318
      %v1351 = vmul.f32 %v1259, %v1319
      %v1352 = vmul.f32 %v1262, %v1320
      %v1353 = vmul.f32 %v1265, %v1321
      %v1354 = vmul.f32 %v1268, %v1322
      %v1355 = vmul.f32 %v1271, %v1323
      %v1356 = vmul.f32 %v1274, %v1324
      %v1357 = vmul.f32 %v1277, %v1325
      %v1358 = vmul.f32 %v1280, %v1326
      %v1359 = vmul.f32 %v1283, %v1327
      %v1360 = vmul.f32 %v1286, %v1328
      %v1361 = vmul.f32 %v1289, %v1329
      %v1362 = vmul.f32 %v1292, %v1330
      %v1363 = vmul.f32 %v1295, %v1331
      %v1364 = vmul.f32 %v1298, %v1332
      %v1365 = vmul.f32 %v1301, %v1333
      %v1366 = vsub.f32 2.0, %v1334
      %v1367 = vsub.f32 2.0, %v1335
      %v1368 = vsub.f32 2.0, %v1336
      %v1369 = vsub.f32 2.0, %v1337
      %v1370 = vsub.f32 2.0, %v1338
      %v1371 = vsub.f32 2.0, %v1339
      %v1372 = vsub.f32 2.0, %v1340
      %v1373 = vsub.f32 2.0, %v1341
      %v1374 = vsub.f32 2.0, %v1342
      %v1375 = vsub.f32 2.0, %v1343
      %v1376 = vsub.f32 2.0, %v1344
      %v1377 = vsub.f32 2.0, %v1345
      %v1378 = vsub.f32 2.0, %v1346
      %v1379 = vsub.f32 2.0, %v1347
      %v1380 = vsub.f32 2.0, %v1348
      %v1381 = vsub.f32 2.0, %v1349
      %v1382 = vsub.f32 2.0, %v1350
      %v1383 = vsub.f32 2.0, %v1351
      %v1384 = vsub.f32 2.0, %v1352
      %v1385 = vsub.f32 2.0, %v1353
      %v1386 = vsub.f32 2.0, %v1354
      %v1387 = vsub.f32 2.0, %v1355
      %v1388 = vsub.f32 2.0, %v1356
      %v1389 = vsub.f32 2.0, %v1357
      %v1390 = vsub.f32 2.0, %v1358
      %v1391 = vsub.f32 2.0, %v1359
      %v1392 = vsub.f32 2.0, %v1360
      %v1393 = vsub.f32 2.0, %v1361
      %v1394 = vsub.f32 2.0, %v1362
      %v1395 = vsub.f32 2.0, %v1363
      %v1396 = vsub.f32 2.0, %v1364
      %v1397 = vsub.f32 2.0, %v1365
      %v1398 = vmul.f32 %v1302, %v1366
      %v1399 = vmul.f32 %v1303, %v1367
      %v1400 = vmul.f32 %v1304, %v1368
      %v1401 = vmul.f32 %v1305, %v1369
      %v1402 = vmul.f32 %v1306, %v1370
      %v1403 = vmul.f32 %v1307, %v1371
      %v1404 = vmul.f32 %v1308, %v1372
      %v1405 = vmul.f32 %v1309, %v1373
      %v1406 = vmul.f32 %v1310, %v1374
      %v1407 = vmul.f32 %v1311, %v1375
      %v1408 = vmul.f32 %v1312, %v1376
      %v1409 = vmul.f32 %v1313, %v1377
      %v1410 = vmul.f32 %v1314, %v1378
      %v1411 = vmul.f32 %v1315, %v1379
      %v1412 = vmul.f32 %v1316, %v1380
      %v1413 = vmul.f32 %v1317, %v1381
      %v1414 = vmul.f32 %v1318, %v1382
      %v1415 = vmul.f32 %v1319, %v1383
      %v1416 = vmul.f32 %v1320, %v1384
      %v1417 = vmul.f32 %v1321, %v1385
      %v1418 = vmul.f32 %v1322, %v1386
      %v1419 = vmul.f32 %v1323, %v1387
      %v1420 = vmul.f32 %v1324, %v1388
      %v1421 = vmul.f32 %v1325, %v1389
      %v1422 = vmul.f32 %v1326, %v1390
      %v1423 = vmul.f32 %v1327, %v1391
      %v1424 = vmul.f32 %v1328, %v1392
      %v1425 = vmul.f32 %v1329, %v1393
      %v1426 = vmul.f32 %v1330, %v1394
      %v1427 = vmul.f32 %v1331, %v1395
      %v1428 = vmul.f32 %v1332, %v1396
      %v1429 = vmul.f32 %v1333, %v1397
      %v1430 = vmul.f32 %v1143, %v1398
      %v1431 = vmul.f32 %v1145, %v1399
      %v1432 = vmul.f32 %v1147, %v1400
      %v1433 = vmul.f32 %v1149, %v1401
      %v1434 = vmul.f32 %v1151, %v1402
      %v1435 = vmul.f32 %v1153, %v1403
      %v1436 = vmul.f32 %v1155, %v1404
      %v1437 = vmul.f32 %v1157, %v1405
      %v1438 = vmul.f32 %v1159, %v1406
      %v1439 = vmul.f32 %v1161, %v1407
      %v1440 = vmul.f32 %v1163, %v1408
      %v1441 = vmul.f32 %v1165, %v1409
      %v1442 = vmul.f32 %v1167, %v1410
      %v1443 = vmul.f32 %v1169, %v1411
      %v1444 = vmul.f32 %v1171, %v1412
      %v1445 = vmul.f32 %v1173, %v1413
      %v1446 = vmul.f32 %v1175, %v1414
      %v1447 = vmul.f32 %v1177, %v1415
      %v1448 = vmul.f32 %v1179, %v1416
      %v1449 = vmul.f32 %v1181, %v1417
      %v1450 = vmul.f32 %v1183, %v1418
      %v1451 = vmul.f32 %v1185, %v1419
      %v1452 = vmul.f32 %v1187, %v1420
      %v1453 = vmul.f32 %v1189, %v1421
      %v1454 = vmul.f32 %v1191, %v1422
      %v1455 = vmul.f32 %v1193, %v1423
      %v1456 = vmul.f32 %v1195, %v1424
      %v1457 = vmul.f32 %v1197, %v1425
      %v1458 = vmul.f32 %v1199, %v1426
      %v1459 = vmul.f32 %v1201, %v1427
      %v1460 = vmul.f32 %v1203, %v1428
      %v1461 = vmul.f32 %v1205, %v1429
      %v1462 = vpack.c.bf16 %v1431, %v1430
      %v1463 = vpack.c.bf16 %v1433, %v1432
      %v1464 = vpack.c.bf16 %v1435, %v1434
      %v1465 = vpack.c.bf16 %v1437, %v1436
      %v1466 = vpack.c.bf16 %v1439, %v1438
      %v1467 = vpack.c.bf16 %v1441, %v1440
      %v1468 = vpack.c.bf16 %v1443, %v1442
      %v1469 = vpack.c.bf16 %v1445, %v1444
      %v1470 = vpack.c.bf16 %v1447, %v1446
      %v1471 = vpack.c.bf16 %v1449, %v1448
      %v1472 = vpack.c.bf16 %v1451, %v1450
      %v1473 = vpack.c.bf16 %v1453, %v1452
      %v1474 = vpack.c.bf16 %v1455, %v1454
      %v1475 = vpack.c.bf16 %v1457, %v1456
      %v1476 = vpack.c.bf16 %v1459, %v1458
      %v1477 = vpack.c.bf16 %v1461, %v1460
      %1478 = vrot.lane.b32.xlu0 %v592, 64
      %v1479 = vpop.permute.xlu0 %1478
      %1480 = vrot.lane.b32.xlu0 %v593, 64
      %v1481 = vpop.permute.xlu0 %1480
      %1482 = vrot.lane.b32.xlu0 %v594, 64
      %v1483 = vpop.permute.xlu0 %1482
      %1484 = vrot.lane.b32.xlu0 %v595, 64
      %v1485 = vpop.permute.xlu0 %1484
      %v1491 = vsel %vm1013, %v1462, 0
      %v1494 = vsel %vm1013, %v1463, 0
      %v1497 = vsel %vm1013, %v1464, 0
      %v1500 = vsel %vm1013, %v1465, 0
      %1502 = vmatprep.subr.bf16.mxu0 0
      %1503 = vmatpush1.bf16.msra.mxu0 %v1479
      %1504 = vmatprep.subr.bf16.mxu0 0
      %1505 = vmatpush1.bf16.msra.mxu0 %v1481
      %1506 = vmatprep.subr.bf16.mxu0 0
      %1507 = vmatpush1.bf16.msra.mxu0 %v1483
      %1508 = vmatprep.subr.bf16.mxu0 0
      %1509 = vmatpush1.bf16.msra.mxu0 %v1485
      %1510 = vmatprep.subr.bf16.mxu0 0
      %1511 = vmatpush1.bf16.msra.mxu0 0
      %1512 = vmatprep.subr.bf16.mxu0 0
      %1513 = vmatpush1.bf16.msra.mxu0 0
      %1514 = vmatprep.subr.bf16.mxu0 0
      %1515 = vmatpush1.bf16.msra.mxu0 0
      %1516 = vmatprep.subr.bf16.mxu0 0
      %1517 = vmatpush1.bf16.msra.mxu0 0
      %1518 = vmatprep.subr.bf16.mxu0 0
      %1519 = vmatpush1.bf16.msra.mxu0 0
      %1520 = vmatprep.subr.bf16.mxu0 0
      %1521 = vmatpush1.bf16.msra.mxu0 0
      %1522 = vmatprep.subr.bf16.mxu0 0
      %1523 = vmatpush1.bf16.msra.mxu0 0
      %1524 = vmatprep.subr.bf16.mxu0 0
      %1525 = vmatpush1.bf16.msra.mxu0 0
      %1526 = vmatprep.subr.bf16.mxu0 0
      %1527 = vmatpush1.bf16.msra.mxu0 0
      %1528 = vmatprep.subr.bf16.mxu0 0
      %1529 = vmatpush1.bf16.msra.mxu0 0
      %1530 = vmatprep.subr.bf16.mxu0 0
      %1531 = vmatpush1.bf16.msra.mxu0 0
      %1532 = vmatprep.subr.bf16.mxu0 0
      %1533 = vmatpush1.bf16.msra.mxu0 0
      %1534 = vmatprep.mubr.bf16.mxu0 0
      %1535 = vmatmul.mubr.bf16.gmra.mrb[0].mxu0 %v1491
      %v1536 = vpop.f32.mrb[0].mxu0
      %v1537 = vadd.f32 0.0, %v1536
      %v1538 = vpop.f32.mrb[0].mxu0
      %v1539 = vpop.f32.mrb[0].mxu0
      %v1540 = vadd.f32 0.0, %v1539
      %v1541 = vpop.f32.mrb[0].mxu0
      %1542 = vmatprep.mubr.bf16.mxu0 0
      %1543 = vmatmul.mubr.bf16.gmra.mrb[0].mxu0 %v1494
      %v1544 = vpop.f32.mrb[0].mxu0
      %v1545 = vadd.f32 0.0, %v1544
      %v1546 = vpop.f32.mrb[0].mxu0
      %v1547 = vpop.f32.mrb[0].mxu0
      %v1548 = vadd.f32 0.0, %v1547
      %v1549 = vpop.f32.mrb[0].mxu0
      %1550 = vmatprep.mubr.bf16.mxu0 0
      %1551 = vmatmul.mubr.bf16.gmra.mrb[0].mxu0 %v1497
      %v1552 = vpop.f32.mrb[0].mxu0
      %v1553 = vadd.f32 0.0, %v1552
      %v1554 = vpop.f32.mrb[0].mxu0
      %v1555 = vpop.f32.mrb[0].mxu0
      %v1556 = vadd.f32 0.0, %v1555
      %v1557 = vpop.f32.mrb[0].mxu0
      %1558 = vmatprep.mubr.bf16.mxu0 0
      %1559 = vmatmul.mubr.bf16.gmra.mrb[0].mxu0 %v1500
      %v1560 = vpop.f32.mrb[0].mxu0
      %v1561 = vadd.f32 0.0, %v1560
      %v1562 = vpop.f32.mrb[0].mxu0
      %v1563 = vpop.f32.mrb[0].mxu0
      %v1564 = vadd.f32 0.0, %v1563
      %v1565 = vpop.f32.mrb[0].mxu0
      %1566 = vdwg.mxu0
      %1567 = vrot.lane.b32.xlu0 %v596, 64
      %v1568 = vpop.permute.xlu0 %1567
      %1569 = vrot.lane.b32.xlu0 %v597, 64
      %v1570 = vpop.permute.xlu0 %1569
      %1571 = vrot.lane.b32.xlu0 %v598, 64
      %v1572 = vpop.permute.xlu0 %1571
      %1573 = vrot.lane.b32.xlu0 %v599, 64
      %v1574 = vpop.permute.xlu0 %1573
      %v1580 = vsel %vm1013, %v1466, 0
      %v1583 = vsel %vm1013, %v1467, 0
      %v1586 = vsel %vm1013, %v1468, 0
      %v1589 = vsel %vm1013, %v1469, 0
      %1591 = vmatprep.subr.bf16.mxu0 0
      %1592 = vmatpush1.bf16.msra.mxu0 %v1568
      %1593 = vmatprep.subr.bf16.mxu0 0
      %1594 = vmatpush1.bf16.msra.mxu0 %v1570
      %1595 = vmatprep.subr.bf16.mxu0 0
      %1596 = vmatpush1.bf16.msra.mxu0 %v1572
      %1597 = vmatprep.subr.bf16.mxu0 0
      %1598 = vmatpush1.bf16.msra.mxu0 %v1574
      %1599 = vmatprep.subr.bf16.mxu0 0
      %1600 = vmatpush1.bf16.msra.mxu0 0
      %1601 = vmatprep.subr.bf16.mxu0 0
      %1602 = vmatpush1.bf16.msra.mxu0 0
      %1603 = vmatprep.subr.bf16.mxu0 0
      %1604 = vmatpush1.bf16.msra.mxu0 0
      %1605 = vmatprep.subr.bf16.mxu0 0
      %1606 = vmatpush1.bf16.msra.mxu0 0
      %1607 = vmatprep.subr.bf16.mxu0 0
      %1608 = vmatpush1.bf16.msra.mxu0 0
      %1609 = vmatprep.subr.bf16.mxu0 0
      %1610 = vmatpush1.bf16.msra.mxu0 0
      %1611 = vmatprep.subr.bf16.mxu0 0
      %1612 = vmatpush1.bf16.msra.mxu0 0
      %1613 = vmatprep.subr.bf16.mxu0 0
      %1614 = vmatpush1.bf16.msra.mxu0 0
      %1615 = vmatprep.subr.bf16.mxu0 0
      %1616 = vmatpush1.bf16.msra.mxu0 0
      %1617 = vmatprep.subr.bf16.mxu0 0
      %1618 = vmatpush1.bf16.msra.mxu0 0
      %1619 = vmatprep.subr.bf16.mxu0 0
      %1620 = vmatpush1.bf16.msra.mxu0 0
      %1621 = vmatprep.subr.bf16.mxu0 0
      %1622 = vmatpush1.bf16.msra.mxu0 0
      %1623 = vmatprep.mubr.bf16.mxu0 0
      %1624 = vmatmul.mubr.bf16.gmra.mrb[0].mxu0 %v1580
      %v1625 = vpop.f32.mrb[0].mxu0
      %v1626 = vadd.f32 0.0, %v1625
      %v1627 = vpop.f32.mrb[0].mxu0
      %v1628 = vpop.f32.mrb[0].mxu0
      %v1629 = vadd.f32 0.0, %v1628
      %v1630 = vpop.f32.mrb[0].mxu0
      %1631 = vmatprep.mubr.bf16.mxu0 0
      %1632 = vmatmul.mubr.bf16.gmra.mrb[0].mxu0 %v1583
      %v1633 = vpop.f32.mrb[0].mxu0
      %v1634 = vadd.f32 0.0, %v1633
      %v1635 = vpop.f32.mrb[0].mxu0
      %v1636 = vpop.f32.mrb[0].mxu0
      %v1637 = vadd.f32 0.0, %v1636
      %v1638 = vpop.f32.mrb[0].mxu0
      %1639 = vmatprep.mubr.bf16.mxu0 0
      %1640 = vmatmul.mubr.bf16.gmra.mrb[0].mxu0 %v1586
      %v1641 = vpop.f32.mrb[0].mxu0
      %v1642 = vadd.f32 0.0, %v1641
      %v1643 = vpop.f32.mrb[0].mxu0
      %v1644 = vpop.f32.mrb[0].mxu0
      %v1645 = vadd.f32 0.0, %v1644
      %v1646 = vpop.f32.mrb[0].mxu0
      %1647 = vmatprep.mubr.bf16.mxu0 0
      %1648 = vmatmul.mubr.bf16.gmra.mrb[0].mxu0 %v1589
      %v1649 = vpop.f32.mrb[0].mxu0
      %v1650 = vadd.f32 0.0, %v1649
      %v1651 = vpop.f32.mrb[0].mxu0
      %v1652 = vpop.f32.mrb[0].mxu0
      %v1653 = vadd.f32 0.0, %v1652
      %v1654 = vpop.f32.mrb[0].mxu0
      %1655 = vdwg.mxu0
      %1656 = vrot.lane.b32.xlu0 %v600, 64
      %v1657 = vpop.permute.xlu0 %1656
      %1658 = vrot.lane.b32.xlu0 %v601, 64
      %v1659 = vpop.permute.xlu0 %1658
      %1660 = vrot.lane.b32.xlu0 %v602, 64
      %v1661 = vpop.permute.xlu0 %1660
      %1662 = vrot.lane.b32.xlu0 %v603, 64
      %v1663 = vpop.permute.xlu0 %1662
      %v1669 = vsel %vm1013, %v1470, 0
      %v1672 = vsel %vm1013, %v1471, 0
      %v1675 = vsel %vm1013, %v1472, 0
      %v1678 = vsel %vm1013, %v1473, 0
      %1680 = vmatprep.subr.bf16.mxu0 0
      %1681 = vmatpush1.bf16.msra.mxu0 %v1657
      %1682 = vmatprep.subr.bf16.mxu0 0
      %1683 = vmatpush1.bf16.msra.mxu0 %v1659
      %1684 = vmatprep.subr.bf16.mxu0 0
      %1685 = vmatpush1.bf16.msra.mxu0 %v1661
      %1686 = vmatprep.subr.bf16.mxu0 0
      %1687 = vmatpush1.bf16.msra.mxu0 %v1663
      %1688 = vmatprep.subr.bf16.mxu0 0
      %1689 = vmatpush1.bf16.msra.mxu0 0
      %1690 = vmatprep.subr.bf16.mxu0 0
      %1691 = vmatpush1.bf16.msra.mxu0 0
      %1692 = vmatprep.subr.bf16.mxu0 0
      %1693 = vmatpush1.bf16.msra.mxu0 0
      %1694 = vmatprep.subr.bf16.mxu0 0
      %1695 = vmatpush1.bf16.msra.mxu0 0
      %1696 = vmatprep.subr.bf16.mxu0 0
      %1697 = vmatpush1.bf16.msra.mxu0 0
      %1698 = vmatprep.subr.bf16.mxu0 0
      %1699 = vmatpush1.bf16.msra.mxu0 0
      %1700 = vmatprep.subr.bf16.mxu0 0
      %1701 = vmatpush1.bf16.msra.mxu0 0
      %1702 = vmatprep.subr.bf16.mxu0 0
      %1703 = vmatpush1.bf16.msra.mxu0 0
      %1704 = vmatprep.subr.bf16.mxu0 0
      %1705 = vmatpush1.bf16.msra.mxu0 0
      %1706 = vmatprep.subr.bf16.mxu0 0
      %1707 = vmatpush1.bf16.msra.mxu0 0
      %1708 = vmatprep.subr.bf16.mxu0 0
      %1709 = vmatpush1.bf16.msra.mxu0 0
      %1710 = vmatprep.subr.bf16.mxu0 0
      %1711 = vmatpush1.bf16.msra.mxu0 0
      %1712 = vmatprep.mubr.bf16.mxu0 0
      %1713 = vmatmul.mubr.bf16.gmra.mrb[0].mxu0 %v1669
      %v1714 = vpop.f32.mrb[0].mxu0
      %v1715 = vadd.f32 0.0, %v1714
      %v1716 = vpop.f32.mrb[0].mxu0
      %v1717 = vpop.f32.mrb[0].mxu0
      %v1718 = vadd.f32 0.0, %v1717
      %v1719 = vpop.f32.mrb[0].mxu0
      %1720 = vmatprep.mubr.bf16.mxu0 0
      %1721 = vmatmul.mubr.bf16.gmra.mrb[0].mxu0 %v1672
      %v1722 = vpop.f32.mrb[0].mxu0
      %v1723 = vadd.f32 0.0, %v1722
      %v1724 = vpop.f32.mrb[0].mxu0
      %v1725 = vpop.f32.mrb[0].mxu0
      %v1726 = vadd.f32 0.0, %v1725
      %v1727 = vpop.f32.mrb[0].mxu0
      %1728 = vmatprep.mubr.bf16.mxu0 0
      %1729 = vmatmul.mubr.bf16.gmra.mrb[0].mxu0 %v1675
      %v1730 = vpop.f32.mrb[0].mxu0
      %v1731 = vadd.f32 0.0, %v1730
      %v1732 = vpop.f32.mrb[0].mxu0
      %v1733 = vpop.f32.mrb[0].mxu0
      %v1734 = vadd.f32 0.0, %v1733
      %v1735 = vpop.f32.mrb[0].mxu0
      %1736 = vmatprep.mubr.bf16.mxu0 0
      %1737 = vmatmul.mubr.bf16.gmra.mrb[0].mxu0 %v1678
      %v1738 = vpop.f32.mrb[0].mxu0
      %v1739 = vadd.f32 0.0, %v1738
      %v1740 = vpop.f32.mrb[0].mxu0
      %v1741 = vpop.f32.mrb[0].mxu0
      %v1742 = vadd.f32 0.0, %v1741
      %v1743 = vpop.f32.mrb[0].mxu0
      %1744 = vdwg.mxu0
      %1745 = vrot.lane.b32.xlu0 %v604, 64
      %v1746 = vpop.permute.xlu0 %1745
      %1747 = vrot.lane.b32.xlu0 %v605, 64
      %v1748 = vpop.permute.xlu0 %1747
      %1749 = vrot.lane.b32.xlu0 %v606, 64
      %v1750 = vpop.permute.xlu0 %1749
      %1751 = vrot.lane.b32.xlu0 %v607, 64
      %v1752 = vpop.permute.xlu0 %1751
      %v1758 = vsel %vm1013, %v1474, 0
      %v1761 = vsel %vm1013, %v1475, 0
      %v1764 = vsel %vm1013, %v1476, 0
      %v1767 = vsel %vm1013, %v1477, 0
      %1769 = vmatprep.subr.bf16.mxu0 0
      %1770 = vmatpush1.bf16.msra.mxu0 %v1746
      %1771 = vmatprep.subr.bf16.mxu0 0
      %1772 = vmatpush1.bf16.msra.mxu0 %v1748
      %1773 = vmatprep.subr.bf16.mxu0 0
      %1774 = vmatpush1.bf16.msra.mxu0 %v1750
      %1775 = vmatprep.subr.bf16.mxu0 0
      %1776 = vmatpush1.bf16.msra.mxu0 %v1752
      %1777 = vmatprep.subr.bf16.mxu0 0
      %1778 = vmatpush1.bf16.msra.mxu0 0
      %1779 = vmatprep.subr.bf16.mxu0 0
      %1780 = vmatpush1.bf16.msra.mxu0 0
      %1781 = vmatprep.subr.bf16.mxu0 0
      %1782 = vmatpush1.bf16.msra.mxu0 0
      %1783 = vmatprep.subr.bf16.mxu0 0
      %1784 = vmatpush1.bf16.msra.mxu0 0
      %1785 = vmatprep.subr.bf16.mxu0 0
      %1786 = vmatpush1.bf16.msra.mxu0 0
      %1787 = vmatprep.subr.bf16.mxu0 0
      %1788 = vmatpush1.bf16.msra.mxu0 0
      %1789 = vmatprep.subr.bf16.mxu0 0
      %1790 = vmatpush1.bf16.msra.mxu0 0
      %1791 = vmatprep.subr.bf16.mxu0 0
      %1792 = vmatpush1.bf16.msra.mxu0 0
      %1793 = vmatprep.subr.bf16.mxu0 0
      %1794 = vmatpush1.bf16.msra.mxu0 0
      %1795 = vmatprep.subr.bf16.mxu0 0
      %1796 = vmatpush1.bf16.msra.mxu0 0
      %1797 = vmatprep.subr.bf16.mxu0 0
      %1798 = vmatpush1.bf16.msra.mxu0 0
      %1799 = vmatprep.subr.bf16.mxu0 0
      %1800 = vmatpush1.bf16.msra.mxu0 0
      %1801 = vmatprep.mubr.bf16.mxu0 0
      %1802 = vmatmul.mubr.bf16.gmra.mrb[0].mxu0 %v1758
      %v1803 = vpop.f32.mrb[0].mxu0
      %v1804 = vadd.f32 0.0, %v1803
      %v1805 = vpop.f32.mrb[0].mxu0
      %v1806 = vpop.f32.mrb[0].mxu0
      %v1807 = vadd.f32 0.0, %v1806
      %v1808 = vpop.f32.mrb[0].mxu0
      %1809 = vmatprep.mubr.bf16.mxu0 0
      %1810 = vmatmul.mubr.bf16.gmra.mrb[0].mxu0 %v1761
      %v1811 = vpop.f32.mrb[0].mxu0
      %v1812 = vadd.f32 0.0, %v1811
      %v1813 = vpop.f32.mrb[0].mxu0
      %v1814 = vpop.f32.mrb[0].mxu0
      %v1815 = vadd.f32 0.0, %v1814
      %v1816 = vpop.f32.mrb[0].mxu0
      %1817 = vmatprep.mubr.bf16.mxu0 0
      %1818 = vmatmul.mubr.bf16.gmra.mrb[0].mxu0 %v1764
      %v1819 = vpop.f32.mrb[0].mxu0
      %v1820 = vadd.f32 0.0, %v1819
      %v1821 = vpop.f32.mrb[0].mxu0
      %v1822 = vpop.f32.mrb[0].mxu0
      %v1823 = vadd.f32 0.0, %v1822
      %v1824 = vpop.f32.mrb[0].mxu0
      %1825 = vmatprep.mubr.bf16.mxu0 0
      %1826 = vmatmul.mubr.bf16.gmra.mrb[0].mxu0 %v1767
      %v1827 = vpop.f32.mrb[0].mxu0
      %v1828 = vadd.f32 0.0, %v1827
      %v1829 = vpop.f32.mrb[0].mxu0
      %v1830 = vpop.f32.mrb[0].mxu0
      %v1831 = vadd.f32 0.0, %v1830
      %v1832 = vpop.f32.mrb[0].mxu0
      %1833 = vdwg.mxu0
      %1842 = vrot.lane.b32.xlu0 %v1626, 8
      %v1843 = vpop.permute.xlu0 %1842
      %1844 = vrot.lane.b32.xlu0 %v1629, 8
      %v1845 = vpop.permute.xlu0 %1844
      %1846 = vrot.lane.b32.xlu0 %v1634, 8
      %v1847 = vpop.permute.xlu0 %1846
      %1848 = vrot.lane.b32.xlu0 %v1637, 8
      %v1849 = vpop.permute.xlu0 %1848
      %1850 = vrot.lane.b32.xlu0 %v1642, 8
      %v1851 = vpop.permute.xlu0 %1850
      %1852 = vrot.lane.b32.xlu0 %v1645, 8
      %v1853 = vpop.permute.xlu0 %1852
      %1854 = vrot.lane.b32.xlu0 %v1650, 8
      %v1855 = vpop.permute.xlu0 %1854
      %1856 = vrot.lane.b32.xlu0 %v1653, 8
      %v1857 = vpop.permute.xlu0 %1856
      %1874 = vrot.lane.b32.xlu0 %v1715, 16
      %v1875 = vpop.permute.xlu0 %1874
      %1876 = vrot.lane.b32.xlu0 %v1718, 16
      %v1877 = vpop.permute.xlu0 %1876
      %1878 = vrot.lane.b32.xlu0 %v1723, 16
      %v1879 = vpop.permute.xlu0 %1878
      %1880 = vrot.lane.b32.xlu0 %v1726, 16
      %v1881 = vpop.permute.xlu0 %1880
      %1882 = vrot.lane.b32.xlu0 %v1731, 16
      %v1883 = vpop.permute.xlu0 %1882
      %1884 = vrot.lane.b32.xlu0 %v1734, 16
      %v1885 = vpop.permute.xlu0 %1884
      %1886 = vrot.lane.b32.xlu0 %v1739, 16
      %v1887 = vpop.permute.xlu0 %1886
      %1888 = vrot.lane.b32.xlu0 %v1742, 16
      %v1889 = vpop.permute.xlu0 %1888
      %1906 = vrot.lane.b32.xlu0 %v1804, 24
      %v1907 = vpop.permute.xlu0 %1906
      %1908 = vrot.lane.b32.xlu0 %v1807, 24
      %v1909 = vpop.permute.xlu0 %1908
      %1910 = vrot.lane.b32.xlu0 %v1812, 24
      %v1911 = vpop.permute.xlu0 %1910
      %1912 = vrot.lane.b32.xlu0 %v1815, 24
      %v1913 = vpop.permute.xlu0 %1912
      %1914 = vrot.lane.b32.xlu0 %v1820, 24
      %v1915 = vpop.permute.xlu0 %1914
      %1916 = vrot.lane.b32.xlu0 %v1823, 24
      %v1917 = vpop.permute.xlu0 %1916
      %1918 = vrot.lane.b32.xlu0 %v1828, 24
      %v1919 = vpop.permute.xlu0 %1918
      %1920 = vrot.lane.b32.xlu0 %v1831, 24
      %v1921 = vpop.permute.xlu0 %1920
      %v1930 = vsel %vm620, %v1537, %v1843
      %v1931 = vsel %vm620, %v1540, %v1845
      %v1932 = vsel %vm620, %v1545, %v1847
      %v1933 = vsel %vm620, %v1548, %v1849
      %v1934 = vsel %vm620, %v1553, %v1851
      %v1935 = vsel %vm620, %v1556, %v1853
      %v1936 = vsel %vm620, %v1561, %v1855
      %v1937 = vsel %vm620, %v1564, %v1857
      %vm1938 = vcmask 130048
      %v1939 = vsel %vm1938, %v1930, %v1875
      %v1940 = vsel %vm1938, %v1931, %v1877
      %v1941 = vsel %vm1938, %v1932, %v1879
      %v1942 = vsel %vm1938, %v1933, %v1881
      %v1943 = vsel %vm1938, %v1934, %v1883
      %v1944 = vsel %vm1938, %v1935, %v1885
      %v1945 = vsel %vm1938, %v1936, %v1887
      %v1946 = vsel %vm1938, %v1937, %v1889
      %vm1947 = vcmask 195584
      %v1948 = vsel %vm1947, %v1939, %v1907
      %v1949 = vsel %vm1947, %v1940, %v1909
      %v1950 = vsel %vm1947, %v1941, %v1911
      %v1951 = vsel %vm1947, %v1942, %v1913
      %v1952 = vsel %vm1947, %v1943, %v1915
      %v1953 = vsel %vm1947, %v1944, %v1917
      %v1954 = vsel %vm1947, %v1945, %v1919
      %v1955 = vsel %vm1947, %v1946, %v1921
      %v1956 = vpack.c.bf16 %v1949, %v1948
      %v1957 = vpack.c.bf16 %v1951, %v1950
      %v1958 = vpack.c.bf16 %v1953, %v1952
      %v1959 = vpack.c.bf16 %v1955, %v1954
      %v1960 = vld [vmem:[%s4] sm:$0xf]
      %v1961 = vld [vmem:[%s4 + $0x4] sm:$0xf]
      %v1962 = vld [vmem:[%s4 + $0x8] sm:$0xf]
      %v1963 = vld [vmem:[%s4 + $0xc] sm:$0xf]
      %v1964 = vlaneseq
      %v1965 = vshrl.u32 %v1964, 7
      %v1966 = vsub.s32 4, %v1965
      %v1967 = vrot.slane %v261, %v1966
      %v1972 = vunpack.c.l.b16 %v1960
      %v1973 = vunpack.c.l.b16 %v1961
      %v1974 = vunpack.c.l.b16 %v1962
      %v1975 = vunpack.c.l.b16 %v1963
      %v1976 = vpack.c.b16 %v1973, %v1972
      %v1977 = vpack.c.b16 %v1975, %v1974
      %v1981 = vsel %vm262, %v1956, 0
      %v1984 = vsel %vm262, %v1957, 0
      %v1987 = vsel %vm262, %v1958, 0
      %v1990 = vsel %vm262, %v1959, 0
      %1992 = vmatprep.subr.bf16.mxu0 0
      %1993 = vmatpush1.bf16.msra.mxu0 %v1976
      %1994 = vmatprep.subr.bf16.mxu0 0
      %1995 = vmatpush1.bf16.msra.mxu0 %v1977
      %1996 = vmatprep.subr.bf16.mxu0 0
      %1997 = vmatpush1.bf16.msra.mxu0 0
      %1998 = vmatprep.subr.bf16.mxu0 0
      %1999 = vmatpush1.bf16.msra.mxu0 0
      %2000 = vmatprep.subr.bf16.mxu0 0
      %2001 = vmatpush1.bf16.msra.mxu0 0
      %2002 = vmatprep.subr.bf16.mxu0 0
      %2003 = vmatpush1.bf16.msra.mxu0 0
      %2004 = vmatprep.subr.bf16.mxu0 0
      %2005 = vmatpush1.bf16.msra.mxu0 0
      %2006 = vmatprep.subr.bf16.mxu0 0
      %2007 = vmatpush1.bf16.msra.mxu0 0
      %2008 = vmatprep.subr.bf16.mxu0 0
      %2009 = vmatpush1.bf16.msra.mxu0 0
      %2010 = vmatprep.subr.bf16.mxu0 0
      %2011 = vmatpush1.bf16.msra.mxu0 0
      %2012 = vmatprep.subr.bf16.mxu0 0
      %2013 = vmatpush1.bf16.msra.mxu0 0
      %2014 = vmatprep.subr.bf16.mxu0 0
      %2015 = vmatpush1.bf16.msra.mxu0 0
      %2016 = vmatprep.subr.bf16.mxu0 0
      %2017 = vmatpush1.bf16.msra.mxu0 0
      %2018 = vmatprep.subr.bf16.mxu0 0
      %2019 = vmatpush1.bf16.msra.mxu0 0
      %2020 = vmatprep.subr.bf16.mxu0 0
      %2021 = vmatpush1.bf16.msra.mxu0 0
      %2022 = vmatprep.subr.bf16.mxu0 0
      %2023 = vmatpush1.bf16.msra.mxu0 0
      %2024 = vmatprep.mubr.bf16.mxu0 0
      %2025 = vmatmul.mubr.bf16.gmra.mrb[0].mxu0 %v1981
      %v2026 = vpop.f32.mrb[0].mxu0
      %v2027 = vadd.f32 %v1967, %v2026
      %v2028 = vpop.f32.mrb[0].mxu0
      %v2029 = vpop.f32.mrb[0].mxu0
      %v2030 = vadd.f32 %v1967, %v2029
      %v2031 = vpop.f32.mrb[0].mxu0
      %2032 = vmatprep.mubr.bf16.mxu0 0
      %2033 = vmatmul.mubr.bf16.gmra.mrb[0].mxu0 %v1984
      %v2034 = vpop.f32.mrb[0].mxu0
      %v2035 = vadd.f32 %v1967, %v2034
      %v2036 = vpop.f32.mrb[0].mxu0
      %v2037 = vpop.f32.mrb[0].mxu0
      %v2038 = vadd.f32 %v1967, %v2037
      %v2039 = vpop.f32.mrb[0].mxu0
      %2040 = vmatprep.mubr.bf16.mxu0 0
      %2041 = vmatmul.mubr.bf16.gmra.mrb[0].mxu0 %v1987
      %v2042 = vpop.f32.mrb[0].mxu0
      %v2043 = vadd.f32 %v1967, %v2042
      %v2044 = vpop.f32.mrb[0].mxu0
      %v2045 = vpop.f32.mrb[0].mxu0
      %v2046 = vadd.f32 %v1967, %v2045
      %v2047 = vpop.f32.mrb[0].mxu0
      %2048 = vmatprep.mubr.bf16.mxu0 0
      %2049 = vmatmul.mubr.bf16.gmra.mrb[0].mxu0 %v1990
      %v2050 = vpop.f32.mrb[0].mxu0
      %v2051 = vadd.f32 %v1967, %v2050
      %v2052 = vpop.f32.mrb[0].mxu0
      %v2053 = vpop.f32.mrb[0].mxu0
      %v2054 = vadd.f32 %v1967, %v2053
      %v2055 = vpop.f32.mrb[0].mxu0
      %2056 = vdwg.mxu0
      %v2057 = vadd.f32 %v2027, %v253
      %v2058 = vadd.f32 %v2030, %v254
      %v2059 = vadd.f32 %v2035, %v255
      %v2060 = vadd.f32 %v2038, %v256
      %v2061 = vadd.f32 %v2043, %v257
      %v2062 = vadd.f32 %v2046, %v258
      %v2063 = vadd.f32 %v2051, %v259
      %v2064 = vadd.f32 %v2054, %v260
      %v2065 = vsel %vm262, %v2057, 0.0
      %2066 = vadd.xlane.f32.xlu0 %v2065
      %v2067 = vpop.xlane.xlu0 %2066
      %v2068 = vsel %vm262, %v2058, 0.0
      %2069 = vadd.xlane.f32.xlu0 %v2068
      %v2070 = vpop.xlane.xlu0 %2069
      %v2071 = vsel %vm262, %v2059, 0.0
      %2072 = vadd.xlane.f32.xlu0 %v2071
      %v2073 = vpop.xlane.xlu0 %2072
      %v2074 = vsel %vm262, %v2060, 0.0
      %2075 = vadd.xlane.f32.xlu0 %v2074
      %v2076 = vpop.xlane.xlu0 %2075
      %v2077 = vsel %vm262, %v2061, 0.0
      %2078 = vadd.xlane.f32.xlu0 %v2077
      %v2079 = vpop.xlane.xlu0 %2078
      %v2080 = vsel %vm262, %v2062, 0.0
      %2081 = vadd.xlane.f32.xlu0 %v2080
      %v2082 = vpop.xlane.xlu0 %2081
      %v2083 = vsel %vm262, %v2063, 0.0
      %2084 = vadd.xlane.f32.xlu0 %v2083
      %v2085 = vpop.xlane.xlu0 %2084
      %v2086 = vsel %vm262, %v2064, 0.0
      %2087 = vadd.xlane.f32.xlu0 %v2086
      %v2088 = vpop.xlane.xlu0 %2087
      %v2089 = vmul.f32 %v2067, %v287
      %v2090 = vmul.f32 %v2070, %v287
      %v2091 = vmul.f32 %v2073, %v287
      %v2092 = vmul.f32 %v2076, %v287
      %v2093 = vmul.f32 %v2079, %v287
      %v2094 = vmul.f32 %v2082, %v287
      %v2095 = vmul.f32 %v2085, %v287
      %v2096 = vmul.f32 %v2088, %v287
      %v2097 = vmul.f32 %v2057, %v2057
      %v2098 = vmul.f32 %v2058, %v2058
      %v2099 = vmul.f32 %v2059, %v2059
      %v2100 = vmul.f32 %v2060, %v2060
      %v2101 = vmul.f32 %v2061, %v2061
      %v2102 = vmul.f32 %v2062, %v2062
      %v2103 = vmul.f32 %v2063, %v2063
      %v2104 = vmul.f32 %v2064, %v2064
      %v2105 = vsel %vm262, %v2097, 0.0
      %2106 = vadd.xlane.f32.xlu0 %v2105
      %v2107 = vpop.xlane.xlu0 %2106
      %v2108 = vsel %vm262, %v2098, 0.0
      %2109 = vadd.xlane.f32.xlu0 %v2108
      %v2110 = vpop.xlane.xlu0 %2109
      %v2111 = vsel %vm262, %v2099, 0.0
      %2112 = vadd.xlane.f32.xlu0 %v2111
      %v2113 = vpop.xlane.xlu0 %2112
      %v2114 = vsel %vm262, %v2100, 0.0
      %2115 = vadd.xlane.f32.xlu0 %v2114
      %v2116 = vpop.xlane.xlu0 %2115
      %v2117 = vsel %vm262, %v2101, 0.0
      %2118 = vadd.xlane.f32.xlu0 %v2117
      %v2119 = vpop.xlane.xlu0 %2118
      %v2120 = vsel %vm262, %v2102, 0.0
      %2121 = vadd.xlane.f32.xlu0 %v2120
      %v2122 = vpop.xlane.xlu0 %2121
      %v2123 = vsel %vm262, %v2103, 0.0
      %2124 = vadd.xlane.f32.xlu0 %v2123
      %v2125 = vpop.xlane.xlu0 %2124
      %v2126 = vsel %vm262, %v2104, 0.0
      %2127 = vadd.xlane.f32.xlu0 %v2126
      %v2128 = vpop.xlane.xlu0 %2127
      %v2129 = vmul.f32 %v2107, %v287
      %v2130 = vmul.f32 %v2110, %v287
      %v2131 = vmul.f32 %v2113, %v287
      %v2132 = vmul.f32 %v2116, %v287
      %v2133 = vmul.f32 %v2119, %v287
      %v2134 = vmul.f32 %v2122, %v287
      %v2135 = vmul.f32 %v2125, %v287
      %v2136 = vmul.f32 %v2128, %v287
      %v2137 = vmul.f32 %v2089, %v2089
      %v2138 = vmul.f32 %v2090, %v2090
      %v2139 = vmul.f32 %v2091, %v2091
      %v2140 = vmul.f32 %v2092, %v2092
      %v2141 = vmul.f32 %v2093, %v2093
      %v2142 = vmul.f32 %v2094, %v2094
      %v2143 = vmul.f32 %v2095, %v2095
      %v2144 = vmul.f32 %v2096, %v2096
      %v2145 = vsub.f32 %v2129, %v2137
      %v2146 = vsub.f32 %v2130, %v2138
      %v2147 = vsub.f32 %v2131, %v2139
      %v2148 = vsub.f32 %v2132, %v2140
      %v2149 = vsub.f32 %v2133, %v2141
      %v2150 = vsub.f32 %v2134, %v2142
      %v2151 = vsub.f32 %v2135, %v2143
      %v2152 = vsub.f32 %v2136, %v2144
      %v2153 = vadd.f32 %v2145, 1e-05
      %v2154 = vadd.f32 %v2146, 1e-05
      %v2155 = vadd.f32 %v2147, 1e-05
      %v2156 = vadd.f32 %v2148, 1e-05
      %v2157 = vadd.f32 %v2149, 1e-05
      %v2158 = vadd.f32 %v2150, 1e-05
      %v2159 = vadd.f32 %v2151, 1e-05
      %v2160 = vadd.f32 %v2152, 1e-05
      %v2161 = vrsqrt.pop %v2153
      %v2162 = vrsqrt.pop %v2154
      %v2163 = vrsqrt.pop %v2155
      %v2164 = vrsqrt.pop %v2156
      %v2165 = vrsqrt.pop %v2157
      %v2166 = vrsqrt.pop %v2158
      %v2167 = vrsqrt.pop %v2159
      %v2168 = vrsqrt.pop %v2160
      %v2169 = vsub.f32 %v2057, %v2089
      %v2170 = vsub.f32 %v2058, %v2090
      %v2171 = vsub.f32 %v2059, %v2091
      %v2172 = vsub.f32 %v2060, %v2092
      %v2173 = vsub.f32 %v2061, %v2093
      %v2174 = vsub.f32 %v2062, %v2094
      %v2175 = vsub.f32 %v2063, %v2095
      %v2176 = vsub.f32 %v2064, %v2096
      %v2177 = vmul.f32 %v2169, %v2161
      %v2178 = vmul.f32 %v2170, %v2162
      %v2179 = vmul.f32 %v2171, %v2163
      %v2180 = vmul.f32 %v2172, %v2164
      %v2181 = vmul.f32 %v2173, %v2165
      %v2182 = vmul.f32 %v2174, %v2166
      %v2183 = vmul.f32 %v2175, %v2167
      %v2184 = vmul.f32 %v2176, %v2168
      %v2185 = vlaneseq
      %v2186 = vshrl.u32 %v2185, 7
      %v2187 = vsub.s32 2, %v2186
      %v2188 = vrot.slane %v261, %v2187
      %v2189 = vmul.f32 %v2177, %v2188
      %v2190 = vmul.f32 %v2178, %v2188
      %v2191 = vmul.f32 %v2179, %v2188
      %v2192 = vmul.f32 %v2180, %v2188
      %v2193 = vmul.f32 %v2181, %v2188
      %v2194 = vmul.f32 %v2182, %v2188
      %v2195 = vmul.f32 %v2183, %v2188
      %v2196 = vmul.f32 %v2184, %v2188
      %v2197 = vlaneseq
      %v2198 = vshrl.u32 %v2197, 7
      %v2199 = vsub.s32 3, %v2198
      %v2200 = vrot.slane %v261, %v2199
      %v2201 = vadd.f32 %v2189, %v2200
      %v2202 = vadd.f32 %v2190, %v2200
      %v2203 = vadd.f32 %v2191, %v2200
      %v2204 = vadd.f32 %v2192, %v2200
      %v2205 = vadd.f32 %v2193, %v2200
      %v2206 = vadd.f32 %v2194, %v2200
      %v2207 = vadd.f32 %v2195, %v2200
      %v2208 = vadd.f32 %v2196, %v2200
      %v2209 = vpack.c.bf16 %v2202, %v2201
      %v2210 = vpack.c.bf16 %v2204, %v2203
      %v2211 = vpack.c.bf16 %v2206, %v2205
      %v2212 = vpack.c.bf16 %v2208, %v2207
      %v2213 = vld [vmem:[%s5] sm:$0xf]
      %v2214 = vld [vmem:[%s5 + $0x4] sm:$0xf]
      %v2215 = vld [vmem:[%s5 + $0x8] sm:$0xf]
      %v2216 = vld [vmem:[%s5 + $0xc] sm:$0xf]
      %v2217 = vlaneseq
      %v2218 = vshrl.u32 %v2217, 7
      %v2219 = vsub.s32 5, %v2218
      %v2220 = vrot.slane %v261, %v2219
      %v2225 = vunpack.c.l.b16 %v2213
      %v2226 = vunpack.c.l.b16 %v2214
      %v2227 = vunpack.c.l.b16 %v2215
      %v2228 = vunpack.c.l.b16 %v2216
      %v2229 = vpack.c.b16 %v2226, %v2225
      %v2230 = vpack.c.b16 %v2228, %v2227
      %v2234 = vsel %vm262, %v2209, 0
      %v2237 = vsel %vm262, %v2210, 0
      %v2240 = vsel %vm262, %v2211, 0
      %v2243 = vsel %vm262, %v2212, 0
      %2245 = vmatprep.subr.bf16.mxu0 0
      %2246 = vmatpush1.bf16.msra.mxu0 %v2229
      %2247 = vmatprep.subr.bf16.mxu0 0
      %2248 = vmatpush1.bf16.msra.mxu0 %v2230
      %2249 = vmatprep.subr.bf16.mxu0 0
      %2250 = vmatpush1.bf16.msra.mxu0 0
      %2251 = vmatprep.subr.bf16.mxu0 0
      %2252 = vmatpush1.bf16.msra.mxu0 0
      %2253 = vmatprep.subr.bf16.mxu0 0
      %2254 = vmatpush1.bf16.msra.mxu0 0
      %2255 = vmatprep.subr.bf16.mxu0 0
      %2256 = vmatpush1.bf16.msra.mxu0 0
      %2257 = vmatprep.subr.bf16.mxu0 0
      %2258 = vmatpush1.bf16.msra.mxu0 0
      %2259 = vmatprep.subr.bf16.mxu0 0
      %2260 = vmatpush1.bf16.msra.mxu0 0
      %2261 = vmatprep.subr.bf16.mxu0 0
      %2262 = vmatpush1.bf16.msra.mxu0 0
      %2263 = vmatprep.subr.bf16.mxu0 0
      %2264 = vmatpush1.bf16.msra.mxu0 0
      %2265 = vmatprep.subr.bf16.mxu0 0
      %2266 = vmatpush1.bf16.msra.mxu0 0
      %2267 = vmatprep.subr.bf16.mxu0 0
      %2268 = vmatpush1.bf16.msra.mxu0 0
      %2269 = vmatprep.subr.bf16.mxu0 0
      %2270 = vmatpush1.bf16.msra.mxu0 0
      %2271 = vmatprep.subr.bf16.mxu0 0
      %2272 = vmatpush1.bf16.msra.mxu0 0
      %2273 = vmatprep.subr.bf16.mxu0 0
      %2274 = vmatpush1.bf16.msra.mxu0 0
      %2275 = vmatprep.subr.bf16.mxu0 0
      %2276 = vmatpush1.bf16.msra.mxu0 0
      %2277 = vmatprep.mubr.bf16.mxu0 0
      %2278 = vmatmul.mubr.bf16.gmra.mrb[0].mxu0 %v2234
      %v2279 = vpop.f32.mrb[0].mxu0
      %v2280 = vadd.f32 %v2220, %v2279
      %v2281 = vpop.f32.mrb[0].mxu0
      %v2282 = vpop.f32.mrb[0].mxu0
      %v2283 = vadd.f32 %v2220, %v2282
      %v2284 = vpop.f32.mrb[0].mxu0
      %2285 = vmatprep.mubr.bf16.mxu0 0
      %2286 = vmatmul.mubr.bf16.gmra.mrb[0].mxu0 %v2237
      %v2287 = vpop.f32.mrb[0].mxu0
      %v2288 = vadd.f32 %v2220, %v2287
      %v2289 = vpop.f32.mrb[0].mxu0
      %v2290 = vpop.f32.mrb[0].mxu0
      %v2291 = vadd.f32 %v2220, %v2290
      %v2292 = vpop.f32.mrb[0].mxu0
      %2293 = vmatprep.mubr.bf16.mxu0 0
      %2294 = vmatmul.mubr.bf16.gmra.mrb[0].mxu0 %v2240
      %v2295 = vpop.f32.mrb[0].mxu0
      %v2296 = vadd.f32 %v2220, %v2295
      %v2297 = vpop.f32.mrb[0].mxu0
      %v2298 = vpop.f32.mrb[0].mxu0
      %v2299 = vadd.f32 %v2220, %v2298
      %v2300 = vpop.f32.mrb[0].mxu0
      %2301 = vmatprep.mubr.bf16.mxu0 0
      %2302 = vmatmul.mubr.bf16.gmra.mrb[0].mxu0 %v2243
      %v2303 = vpop.f32.mrb[0].mxu0
      %v2304 = vadd.f32 %v2220, %v2303
      %v2305 = vpop.f32.mrb[0].mxu0
      %v2306 = vpop.f32.mrb[0].mxu0
      %v2307 = vadd.f32 %v2220, %v2306
      %v2308 = vpop.f32.mrb[0].mxu0
      %2309 = vdwg.mxu0
      %v2310 = vmul.f32 %v2280, 0.5
      %v2311 = vmul.f32 %v2283, 0.5
      %v2312 = vmul.f32 %v2288, 0.5
      %v2313 = vmul.f32 %v2291, 0.5
      %v2314 = vmul.f32 %v2296, 0.5
      %v2315 = vmul.f32 %v2299, 0.5
      %v2316 = vmul.f32 %v2304, 0.5
      %v2317 = vmul.f32 %v2307, 0.5
      %v2318 = vmul.f32 %v2280, 0.70710677
      %v2319 = vmul.f32 %v2283, 0.70710677
      %v2320 = vmul.f32 %v2288, 0.70710677
      %v2321 = vmul.f32 %v2291, 0.70710677
      %v2322 = vmul.f32 %v2296, 0.70710677
      %v2323 = vmul.f32 %v2299, 0.70710677
      %v2324 = vmul.f32 %v2304, 0.70710677
      %v2325 = vmul.f32 %v2307, 0.70710677
      %v2326 = verf.f32.pop %v2318
      %v2327 = verf.f32.pop %v2319
      %v2328 = verf.f32.pop %v2320
      %v2329 = verf.f32.pop %v2321
      %v2330 = verf.f32.pop %v2322
      %v2331 = verf.f32.pop %v2323
      %v2332 = verf.f32.pop %v2324
      %v2333 = verf.f32.pop %v2325
      %v2334 = vadd.f32 %v2326, 1.0
      %v2335 = vadd.f32 %v2327, 1.0
      %v2336 = vadd.f32 %v2328, 1.0
      %v2337 = vadd.f32 %v2329, 1.0
      %v2338 = vadd.f32 %v2330, 1.0
      %v2339 = vadd.f32 %v2331, 1.0
      %v2340 = vadd.f32 %v2332, 1.0
      %v2341 = vadd.f32 %v2333, 1.0
      %v2342 = vmul.f32 %v2310, %v2334
      %v2343 = vmul.f32 %v2311, %v2335
      %v2344 = vmul.f32 %v2312, %v2336
      %v2345 = vmul.f32 %v2313, %v2337
      %v2346 = vmul.f32 %v2314, %v2338
      %v2347 = vmul.f32 %v2315, %v2339
      %v2348 = vmul.f32 %v2316, %v2340
      %v2349 = vmul.f32 %v2317, %v2341
      %v2350 = vpack.c.bf16 %v2343, %v2342
      %v2351 = vpack.c.bf16 %v2345, %v2344
      %v2352 = vpack.c.bf16 %v2347, %v2346
      %v2353 = vpack.c.bf16 %v2349, %v2348
      %s2354 = scalar_lea.vmem %s5, 16
      %v2355 = vld [vmem:[%s2354] sm:$0xf]
      %v2356 = vld [vmem:[%s2354 + $0x4] sm:$0xf]
      %v2357 = vld [vmem:[%s2354 + $0x8] sm:$0xf]
      %v2358 = vld [vmem:[%s2354 + $0xc] sm:$0xf]
      %v2359 = vlaneseq
      %v2360 = vshrl.u32 %v2359, 7
      %v2361 = vsub.s32 6, %v2360
      %v2362 = vrot.slane %v261, %v2361
      %v2367 = vunpack.c.l.b16 %v2355
      %v2368 = vunpack.c.l.b16 %v2356
      %v2369 = vunpack.c.l.b16 %v2357
      %v2370 = vunpack.c.l.b16 %v2358
      %v2371 = vpack.c.b16 %v2368, %v2367
      %v2372 = vpack.c.b16 %v2370, %v2369
      %v2376 = vsel %vm262, %v2350, 0
      %v2379 = vsel %vm262, %v2351, 0
      %v2382 = vsel %vm262, %v2352, 0
      %v2385 = vsel %vm262, %v2353, 0
      %2387 = vmatprep.subr.bf16.mxu0 0
      %2388 = vmatpush1.bf16.msra.mxu0 %v2371
      %2389 = vmatprep.subr.bf16.mxu0 0
      %2390 = vmatpush1.bf16.msra.mxu0 %v2372
      %2391 = vmatprep.subr.bf16.mxu0 0
      %2392 = vmatpush1.bf16.msra.mxu0 0
      %2393 = vmatprep.subr.bf16.mxu0 0
      %2394 = vmatpush1.bf16.msra.mxu0 0
      %2395 = vmatprep.subr.bf16.mxu0 0
      %2396 = vmatpush1.bf16.msra.mxu0 0
      %2397 = vmatprep.subr.bf16.mxu0 0
      %2398 = vmatpush1.bf16.msra.mxu0 0
      %2399 = vmatprep.subr.bf16.mxu0 0
      %2400 = vmatpush1.bf16.msra.mxu0 0
      %2401 = vmatprep.subr.bf16.mxu0 0
      %2402 = vmatpush1.bf16.msra.mxu0 0
      %2403 = vmatprep.subr.bf16.mxu0 0
      %2404 = vmatpush1.bf16.msra.mxu0 0
      %2405 = vmatprep.subr.bf16.mxu0 0
      %2406 = vmatpush1.bf16.msra.mxu0 0
      %2407 = vmatprep.subr.bf16.mxu0 0
      %2408 = vmatpush1.bf16.msra.mxu0 0
      %2409 = vmatprep.subr.bf16.mxu0 0
      %2410 = vmatpush1.bf16.msra.mxu0 0
      %2411 = vmatprep.subr.bf16.mxu0 0
      %2412 = vmatpush1.bf16.msra.mxu0 0
      %2413 = vmatprep.subr.bf16.mxu0 0
      %2414 = vmatpush1.bf16.msra.mxu0 0
      %2415 = vmatprep.subr.bf16.mxu0 0
      %2416 = vmatpush1.bf16.msra.mxu0 0
      %2417 = vmatprep.subr.bf16.mxu0 0
      %2418 = vmatpush1.bf16.msra.mxu0 0
      %2419 = vmatprep.mubr.bf16.mxu0 0
      %2420 = vmatmul.mubr.bf16.gmra.mrb[0].mxu0 %v2376
      %v2421 = vpop.f32.mrb[0].mxu0
      %v2422 = vadd.f32 %v2362, %v2421
      %v2423 = vpop.f32.mrb[0].mxu0
      %v2424 = vpop.f32.mrb[0].mxu0
      %v2425 = vadd.f32 %v2362, %v2424
      %v2426 = vpop.f32.mrb[0].mxu0
      %2427 = vmatprep.mubr.bf16.mxu0 0
      %2428 = vmatmul.mubr.bf16.gmra.mrb[0].mxu0 %v2379
      %v2429 = vpop.f32.mrb[0].mxu0
      %v2430 = vadd.f32 %v2362, %v2429
      %v2431 = vpop.f32.mrb[0].mxu0
      %v2432 = vpop.f32.mrb[0].mxu0
      %v2433 = vadd.f32 %v2362, %v2432
      %v2434 = vpop.f32.mrb[0].mxu0
      %2435 = vmatprep.mubr.bf16.mxu0 0
      %2436 = vmatmul.mubr.bf16.gmra.mrb[0].mxu0 %v2382
      %v2437 = vpop.f32.mrb[0].mxu0
      %v2438 = vadd.f32 %v2362, %v2437
      %v2439 = vpop.f32.mrb[0].mxu0
      %v2440 = vpop.f32.mrb[0].mxu0
      %v2441 = vadd.f32 %v2362, %v2440
      %v2442 = vpop.f32.mrb[0].mxu0
      %2443 = vmatprep.mubr.bf16.mxu0 0
      %2444 = vmatmul.mubr.bf16.gmra.mrb[0].mxu0 %v2385
      %v2445 = vpop.f32.mrb[0].mxu0
      %v2446 = vadd.f32 %v2362, %v2445
      %v2447 = vpop.f32.mrb[0].mxu0
      %v2448 = vpop.f32.mrb[0].mxu0
      %v2449 = vadd.f32 %v2362, %v2448
      %v2450 = vpop.f32.mrb[0].mxu0
      %2451 = vdwg.mxu0
      %v2452 = vadd.f32 %v2422, %v2057
      %v2453 = vadd.f32 %v2425, %v2058
      %v2454 = vadd.f32 %v2430, %v2059
      %v2455 = vadd.f32 %v2433, %v2060
      %v2456 = vadd.f32 %v2438, %v2061
      %v2457 = vadd.f32 %v2441, %v2062
      %v2458 = vadd.f32 %v2446, %v2063
      %v2459 = vadd.f32 %v2449, %v2064
      %2460 = vst.msk [vmem:[%s251] sm:$0xff] %vm262, %v2452
      %2461 = vst.msk [vmem:[%s251 + $0x8] sm:$0xff] %vm262, %v2453
      %2462 = vst.msk [vmem:[%s251 + $0x10] sm:$0xff] %vm262, %v2454
      %2463 = vst.msk [vmem:[%s251 + $0x18] sm:$0xff] %vm262, %v2455
      %2464 = vst.msk [vmem:[%s251 + $0x20] sm:$0xff] %vm262, %v2456
      %2465 = vst.msk [vmem:[%s251 + $0x28] sm:$0xff] %vm262, %v2457
      %2466 = vst.msk [vmem:[%s251 + $0x30] sm:$0xff] %vm262, %v2458
      %2467 = vst.msk [vmem:[%s251 + $0x38] sm:$0xff] %vm262, %v2459
      %p2468 = scmp.lt.s32.totalorder %s17, 1
      %s2469 = scalar_select %p2468, %s17, 1
      %s2470 = smul.addr %s2469, 8
      %s2471 = smul.addr %s2470, 8
      %s2472 = scalar_lea.vmem %s6, %s2471
      // Predicated region
      $region45: #{tpu_custom_call.1} parent=43 // pred_check
        %p2473 = pneg %p166
      $region46: #{tpu_custom_call.1} parent=43 // pred_check_branch
        %2475 = sbr.rel (%p2473) target = $region48
      $region47: #{tpu_custom_call.1} parent=43 // pred_region
        _
      $region48: #{tpu_custom_call.1} parent=43 // pred_fallthru
        _
    $region44: #{tpu_custom_call.1} parent=5 // pred_fallthru
      _
    %p2476 = scmp.le.s32.totalorder 2, %s12
    // Predicated region
    $region49: #{tpu_custom_call.1} parent=5 // pred_check
      %p2477 = pneg %p2476
    $region50: #{tpu_custom_call.1} parent=5 // pred_check_branch
      %2479 = sbr.rel (%p2477) target = $region52
    $region51: #{tpu_custom_call.1} parent=5 // pred_region
      %s2480 = ssub.s32 %s12, 2
      // Predicated region
      $region53: #{tpu_custom_call.1} parent=51 // pred_check
        %p2481 = pneg %p172
      $region54: #{tpu_custom_call.1} parent=51 // pred_check_branch
        %2483 = sbr.rel (%p2481) target = $region56
      $region55: #{tpu_custom_call.1} parent=51 // pred_region
        %p2484 = scmp.lt.s32.totalorder %s18, 1
        %s2485 = scalar_select %p2484, %s18, 1
        %s2486 = smul.addr %s2485, 8
        %s2487 = smul.addr %s2486, 8
        %s2488 = scalar_lea.vmem %s6, %s2487
      $region56: #{tpu_custom_call.1} parent=51 // pred_fallthru
        _
    $region52: #{tpu_custom_call.1} parent=5 // pred_fallthru
      _
  $region6: #{tpu_custom_call.1} parent=0 // loop_footer
    %s16 = sadd.s32 1, %s12
  $region7: #{tpu_custom_call.1} parent=0 // loop_footer_branch
    %11 = sbr.rel target = $region3
  $region8: #{tpu_custom_call.1} parent=0 // loop_exit
    _

</llo_original>
